<compile_context>
chip_gen: v7x
topology: tpu7x:2x2x1
jax: 0.10.0
libtpu: 0.0.40
codegen_flags: <defaults>
</compile_context>

<pallas_src>
import math

import jax
import jax.numpy as jnp
import numpy as np
from jax.experimental import pallas as pl
from jax.experimental.pallas import tpu as pltpu

WINDOW_SIZE = 7
MAX_VAL = 255.0
C1 = (0.01 * MAX_VAL) ** 2
C2 = (0.03 * MAX_VAL) ** 2
LEVELS = 3
MS_WEIGHTS = np.array([0.0448, 0.2856, 0.3001], dtype=np.float32)
_SIGMA = 1.5 * WINDOW_SIZE / 11.0
_NUM_STATS = 5          # x1, x2, x1*x1, x2*x2, x1*x2
_MAX_PACKED_W = 256     # cap on packed lane width (bounds the (Wp, Wp) band matrix)


def _gaussian_1d(window_size, sigma):
    g = np.array(
        [math.exp(-((x - window_size // 2) ** 2) / (2.0 * sigma ** 2))
         for x in range(window_size)],
        dtype=np.float64,
    )
    return (g / g.sum()).astype(np.float32)


_G1D = _gaussian_1d(WINDOW_SIZE, _SIGMA)


def _band_matrix(n):
    """Banded Toeplitz B with B[i, j] = g[j - i + 3] for |j - i| <= 3.

    Left-multiplying by B applies the zero-padded 1-D Gaussian conv along rows;
    right-multiplying applies it along columns (B is symmetric because the
    Gaussian taps are symmetric)."""
    pad = WINDOW_SIZE // 2
    m = np.zeros((n, n), dtype=np.float32)
    for i in range(n):
        for d in range(WINDOW_SIZE):
            j = i + d - pad
            if 0 <= j < n:
                m[i, j] = _G1D[d]
    return m


def _pool_matrices(h, w):
    """P_H (h/2, h), P_W (w, w/2) such that P_H @ X @ P_W == avg_pool2d(X, 2, 2)."""
    ph = np.zeros((h // 2, h), dtype=np.float32)
    for i in range(h // 2):
        ph[i, 2 * i] = 0.5
        ph[i, 2 * i + 1] = 0.5
    pw = np.zeros((w, w // 2), dtype=np.float32)
    for j in range(w // 2):
        pw[2 * j, j] = 0.5
        pw[2 * j + 1, j] = 0.5
    return ph, pw


def _pick_pack_factor(n, w):
    """How many images to pack side-by-side along lanes per grid step.

    Prefer a packed width that is a multiple of 128 lanes, then keeping at
    least 2 grid steps (so v7x's second TensorCore has work), then larger P."""
    cands = [p for p in range(1, n + 1) if n % p == 0 and p * w <= _MAX_PACKED_W]
    if not cands:
        return 1
    return max(cands, key=lambda p: (int((p * w) % 128 == 0),
                                     int((n // p) >= 2),
                                     p))


def _msssim_kernel(img1_ref, img2_ref, *rest):
    """One grid step = one group of P lane-packed images.  Produces
    sum(ssim_map) and sum(mcs_map) for all LEVELS levels; the 2x2 avg pool
    between levels is done in-kernel (pyramid never touches HBM)."""
    const_refs = rest[:-1]
    out_ref = rest[-1]

    band_refs = const_refs[: 2 * LEVELS]      # (bh5_l, bw_l) per level
    pool_refs = const_refs[2 * LEVELS:]       # (ph2_l, pw_l) per transition

    x1 = img1_ref[0]                          # (H, P*W) float32
    x2 = img2_ref[0]

    sums = []                                 # ssim0, mcs0, ssim1, mcs1, ssim2, mcs2
    for lvl in range(LEVELS):
        bh5 = band_refs[2 * lvl][...]         # (5h, 5h) = kron(I_5, band_h)
        bw = band_refs[2 * lvl + 1][...]      # (wp, wp) = kron(I_P, band_w)
        h = x1.shape[0]

        # Five statistic planes stacked along sublanes -> ONE matmul per conv
        # direction for all five planes (separable 7x7 Gaussian, zero padded).
        slab = jnp.concatenate([x1, x2, x1 * x1, x2 * x2, x1 * x2], axis=0)
        slab = jnp.dot(slab, bw, preferred_element_type=jnp.float32)   # W pass
        slab = jnp.dot(bh5, slab, preferred_element_type=jnp.float32)  # H pass

        mu1 = slab[0 * h:1 * h]               # sublane-aligned static slices
        mu2 = slab[1 * h:2 * h]
        s11 = slab[2 * h:3 * h]
        s22 = slab[3 * h:4 * h]
        s12 = slab[4 * h:5 * h]

        mu1_sq = mu1 * mu1
        mu2_sq = mu2 * mu2
        mu1_mu2 = mu1 * mu2
        sigma1_sq = s11 - mu1_sq
        sigma2_sq = s22 - mu2_sq
        sigma12 = s12 - mu1_mu2

        v1 = 2.0 * sigma12 + C2
        v2 = sigma1_sq + sigma2_sq + C2
        inv_v2 = 1.0 / v2                     # shared between both maps
        mcs_map = v1 * inv_v2
        ssim_map = mcs_map * ((2.0 * mu1_mu2 + C1) / (mu1_sq + mu2_sq + C1))

        sums.append(jnp.sum(ssim_map))
        sums.append(jnp.sum(mcs_map))

        if lvl < LEVELS - 1:
            ph2 = pool_refs[2 * lvl][...]     # (h, 2h)    = kron(I_2, pool_h)
            pw = pool_refs[2 * lvl + 1][...]  # (wp, wp/2) = kron(I_P, pool_w)
            stack12 = jnp.concatenate([x1, x2], axis=0)                 # (2h, wp)
            pooled = jnp.dot(
                jnp.dot(ph2, stack12, preferred_element_type=jnp.float32),
                pw, preferred_element_type=jnp.float32)                 # (h, wp/2)
            x1 = pooled[: h // 2]
            x2 = pooled[h // 2:]

    # Pack the 6 per-group partial sums into one lane-contiguous (1,1,6) block.
    lane = jax.lax.broadcasted_iota(jnp.int32, (1, 1, 2 * LEVELS), 2)
    row = jnp.zeros((1, 1, 2 * LEVELS), jnp.float32)
    for i, s in enumerate(sums):
        row = jnp.where(lane == i, s, row)
    out_ref[...] = row


def ms_ssim_forward(img1, img2):
    """img1/img2: (N, 1, H, W) float — matches MS_SSIM.forward (channel == 1)."""
    N, C, H, W = img1.shape
    if C != 1:
        raise ValueError("MS_SSIM port supports channel == 1 only")
    if H % (2 ** (LEVELS - 1)) != 0 or W % (2 ** (LEVELS - 1)) != 0:
        # TODO(synk): F.avg_pool2d floors odd sizes; this port requires evenness.
        raise ValueError("H and W must be divisible by 4 (two 2x2 pooling steps)")

    P = _pick_pack_factor(N, W)
    G = N // P
    Wp = P * W

    # Lane-pack P images side by side along W: (N,1,H,W) -> (G, H, P*W).
    def pack(x):
        return (jnp.asarray(x, dtype=jnp.float32)
                .reshape(G, P, H, W)
                .transpose(0, 2, 1, 3)
                .reshape(G, H, Wp))

    x1 = pack(img1)
    x2 = pack(img2)

    level_shapes = [(H >> l, W >> l) for l in range(LEVELS)]

    # Host-side constant matrices (band convs + pools), block-diagonal where
    # needed so packed images / stacked planes never mix.
    consts_np = []
    for (h, w) in level_shapes:
        consts_np.append(np.kron(np.eye(_NUM_STATS, dtype=np.float32), _band_matrix(h)))
        consts_np.append(np.kron(np.eye(P, dtype=np.float32), _band_matrix(w)))
    for lvl in range(LEVELS - 1):
        h, w = level_shapes[lvl]
        ph, pw = _pool_matrices(h, w)
        consts_np.append(np.kron(np.eye(2, dtype=np.float32), ph))
        consts_np.append(np.kron(np.eye(P, dtype=np.float32), pw))
    consts = [jnp.asarray(c) for c in consts_np]

    img_spec = pl.BlockSpec((1, H, Wp), lambda b: (b, 0, 0))
    # Constants are fetched once (constant index_map) -> single-buffer them.
    const_specs = [
        pl.BlockSpec(c.shape, lambda b: (0, 0), pipeline_mode=pl.Buffered(1))
        for c in consts_np
    ]

    # VMEM budget: double-buffered image blocks + single-buffered constants
    # + a generous estimate of live slabs / maps per level, plus slack.
    f32 = 4
    img_bytes = 2 * 2 * H * Wp * f32
    const_bytes = sum(int(np.prod(c.shape)) * f32 for c in consts_np)
    live_bytes = sum(16 * h * (P * w) * f32 for (h, w) in level_shapes)
    vmem_limit = img_bytes + const_bytes + live_bytes + (4 << 20)
    vmem_limit = int(min(max(vmem_limit, 32 << 20), 96 << 20))

    sums = pl.pallas_call(
        _msssim_kernel,
        out_shape=jax.ShapeDtypeStruct((G, 1, 2 * LEVELS), jnp.float32),
        grid_spec=pltpu.PrefetchScalarGridSpec(
            num_scalar_prefetch=0,
            grid=(G,),
            in_specs=[img_spec, img_spec] + const_specs,
            out_specs=pl.BlockSpec((1, 1, 2 * LEVELS), lambda b: (b, 0, 0)),
        ),
        compiler_params=pltpu.CompilerParams(
            dimension_semantics=("parallel",),
            vmem_limit_bytes=vmem_limit,
        ),
    )(x1, x2, *consts)

    sums = jnp.sum(sums, axis=0)[0]          # (2*LEVELS,), summed over all groups

    weight = jnp.asarray(MS_WEIGHTS)
    msssim = []
    mcs = []
    for lvl, (h, w) in enumerate(level_shapes):
        denom = float(N * h * w)             # mean over (N, 1, h, w)
        msssim.append(sums[2 * lvl] / denom)
        mcs.append(sums[2 * lvl + 1] / denom)
    msssim = jnp.stack(msssim)
    mcs = jnp.stack(mcs)

    # Same final combination as the PyTorch reference (no clamping).
    value = (jnp.prod(mcs[: LEVELS - 1] ** weight[: LEVELS - 1])
             * msssim[LEVELS - 1] ** weight[LEVELS - 1])
    return value


if __name__ == "__main__":
    key = jax.random.PRNGKey(0)
    k1, k2 = jax.random.split(key)
    # Channel must be 1 (the PyTorch module's conv weights have in_channels=1);
    # spatial size divisible by 4 so both 2x2 pooled levels are exact.
    # N=8, W=32 packs into 2 grid steps of 4 lane-packed images (128 lanes) each,
    # so both v7x TensorCores get work.
    img1 = jax.random.uniform(k1, (8, 1, 32, 32), jnp.float32, 0.0, 255.0)
    img2 = jax.random.uniform(k2, (8, 1, 32, 32), jnp.float32, 0.0, 255.0)

    out = jax.jit(ms_ssim_forward)(img1, img2)
    jax.block_until_ready(out)
    print("KERNEL_OK")
</pallas_src>

<mosaic_0001>
module attributes {stable_mosaic.version = 11 : i64} {
  func.func @_msssim_kernel(%arg0: i32, %arg1: memref<1x32x128xf32, #tpu.memory_space<vmem>>, %arg2: memref<1x32x128xf32, #tpu.memory_space<vmem>>, %arg3: memref<160x160xf32, #tpu.memory_space<vmem>>, %arg4: memref<128x128xf32, #tpu.memory_space<vmem>>, %arg5: memref<80x80xf32, #tpu.memory_space<vmem>>, %arg6: memref<64x64xf32, #tpu.memory_space<vmem>>, %arg7: memref<40x40xf32, #tpu.memory_space<vmem>>, %arg8: memref<32x32xf32, #tpu.memory_space<vmem>>, %arg9: memref<32x64xf32, #tpu.memory_space<vmem>>, %arg10: memref<128x64xf32, #tpu.memory_space<vmem>>, %arg11: memref<16x32xf32, #tpu.memory_space<vmem>>, %arg12: memref<64x32xf32, #tpu.memory_space<vmem>>, %arg13: memref<1x1x6xf32, #tpu.memory_space<vmem>>) attributes {dimension_semantics = [#tpu.dimension_semantics<parallel>], iteration_bounds = array<i64: 2>, scalar_prefetch = 0 : i64, scratch_operands = 0 : i64, tpu.core_type = #tpu.core_type<tc>, window_params = [{transform_indices = @transform_0, window_bounds = array<i64: 1, 32, 128>}, {transform_indices = @transform_1, window_bounds = array<i64: 1, 32, 128>}, {pipeline_mode = #tpu.pipeline_mode<synchronous>, transform_indices = @transform_2, window_bounds = array<i64: 160, 160>}, {pipeline_mode = #tpu.pipeline_mode<synchronous>, transform_indices = @transform_3, window_bounds = array<i64: 128, 128>}, {pipeline_mode = #tpu.pipeline_mode<synchronous>, transform_indices = @transform_4, window_bounds = array<i64: 80, 80>}, {pipeline_mode = #tpu.pipeline_mode<synchronous>, transform_indices = @transform_5, window_bounds = array<i64: 64, 64>}, {pipeline_mode = #tpu.pipeline_mode<synchronous>, transform_indices = @transform_6, window_bounds = array<i64: 40, 40>}, {pipeline_mode = #tpu.pipeline_mode<synchronous>, transform_indices = @transform_7, window_bounds = array<i64: 32, 32>}, {pipeline_mode = #tpu.pipeline_mode<synchronous>, transform_indices = @transform_8, window_bounds = array<i64: 32, 64>}, {pipeline_mode = #tpu.pipeline_mode<synchronous>, transform_indices = @transform_9, window_bounds = array<i64: 128, 64>}, {pipeline_mode = #tpu.pipeline_mode<synchronous>, transform_indices = @transform_10, window_bounds = array<i64: 16, 32>}, {pipeline_mode = #tpu.pipeline_mode<synchronous>, transform_indices = @transform_11, window_bounds = array<i64: 64, 32>}, {transform_indices = @transform_12, window_bounds = array<i64: 1, 1, 6>}]} {
    %c0 = arith.constant 0 : index
    %c0_0 = arith.constant 0 : index
    %c0_1 = arith.constant 0 : index
    %0 = vector.load %arg1[%c0, %c0_0, %c0_1] : memref<1x32x128xf32, #tpu.memory_space<vmem>>, vector<1x32x128xf32>
    %1 = vector.shape_cast %0 : vector<1x32x128xf32> to vector<32x128xf32>
    %c0_2 = arith.constant 0 : index
    %c0_3 = arith.constant 0 : index
    %c0_4 = arith.constant 0 : index
    %2 = vector.load %arg2[%c0_2, %c0_3, %c0_4] : memref<1x32x128xf32, #tpu.memory_space<vmem>>, vector<1x32x128xf32>
    %3 = vector.shape_cast %2 : vector<1x32x128xf32> to vector<32x128xf32>
    %c0_5 = arith.constant 0 : index
    %c0_6 = arith.constant 0 : index
    %4 = vector.load %arg3[%c0_5, %c0_6] : memref<160x160xf32, #tpu.memory_space<vmem>>, vector<160x160xf32>
    %c0_7 = arith.constant 0 : index
    %c0_8 = arith.constant 0 : index
    %5 = vector.load %arg4[%c0_7, %c0_8] : memref<128x128xf32, #tpu.memory_space<vmem>>, vector<128x128xf32>
    %6 = arith.mulf %1, %1 : vector<32x128xf32>
    %7 = arith.mulf %3, %3 : vector<32x128xf32>
    %8 = arith.mulf %1, %3 : vector<32x128xf32>
    %9 = tpu.concatenate %1, %3, %6, %7, %8 in 0 : vector<32x128xf32>, vector<32x128xf32>, vector<32x128xf32>, vector<32x128xf32>, vector<32x128xf32> -> vector<160x128xf32>
    %cst = arith.constant dense<0.000000e+00> : vector<160x128xf32>
    %10 = tpu.matmul %9, %5, %cst {dimension_numbers = #tpu.dot_dimension_numbers<[1], [0], [0], [1], [0, 0, 1, 1], [], []>} : vector<160x128xf32>, vector<128x128xf32>, vector<160x128xf32> -> vector<160x128xf32>
    %cst_9 = arith.constant dense<0.000000e+00> : vector<160x128xf32>
    %11 = tpu.matmul %4, %10, %cst_9 {dimension_numbers = #tpu.dot_dimension_numbers<[1], [0], [0], [1], [0, 0, 1, 1], [], []>} : vector<160x160xf32>, vector<160x128xf32>, vector<160x128xf32> -> vector<160x128xf32>
    %12 = vector.extract_strided_slice %11 {offsets = [0, 0], sizes = [32, 128], strides = [1, 1]} : vector<160x128xf32> to vector<32x128xf32>
    %13 = vector.extract_strided_slice %11 {offsets = [32, 0], sizes = [32, 128], strides = [1, 1]} : vector<160x128xf32> to vector<32x128xf32>
    %14 = vector.extract_strided_slice %11 {offsets = [64, 0], sizes = [32, 128], strides = [1, 1]} : vector<160x128xf32> to vector<32x128xf32>
    %15 = vector.extract_strided_slice %11 {offsets = [96, 0], sizes = [32, 128], strides = [1, 1]} : vector<160x128xf32> to vector<32x128xf32>
    %16 = vector.extract_strided_slice %11 {offsets = [128, 0], sizes = [32, 128], strides = [1, 1]} : vector<160x128xf32> to vector<32x128xf32>
    %17 = arith.mulf %12, %12 : vector<32x128xf32>
    %18 = arith.mulf %13, %13 : vector<32x128xf32>
    %19 = arith.mulf %12, %13 : vector<32x128xf32>
    %20 = arith.subf %14, %17 : vector<32x128xf32>
    %21 = arith.subf %15, %18 : vector<32x128xf32>
    %22 = arith.subf %16, %19 : vector<32x128xf32>
    %cst_10 = arith.constant 2.000000e+00 : f32
    %23 = vector.broadcast %cst_10 : f32 to vector<32x128xf32>
    %24 = arith.mulf %23, %22 : vector<32x128xf32>
    %cst_11 = arith.constant 5.852250e+01 : f32
    %25 = vector.broadcast %cst_11 : f32 to vector<32x128xf32>
    %26 = arith.addf %24, %25 : vector<32x128xf32>
    %27 = arith.addf %20, %21 : vector<32x128xf32>
    %cst_12 = arith.constant 5.852250e+01 : f32
    %28 = vector.broadcast %cst_12 : f32 to vector<32x128xf32>
    %29 = arith.addf %27, %28 : vector<32x128xf32>
    %cst_13 = arith.constant 1.000000e+00 : f32
    %30 = vector.broadcast %cst_13 : f32 to vector<32x128xf32>
    %31 = arith.divf %30, %29 : vector<32x128xf32>
    %32 = arith.mulf %26, %31 : vector<32x128xf32>
    %cst_14 = arith.constant 2.000000e+00 : f32
    %33 = vector.broadcast %cst_14 : f32 to vector<32x128xf32>
    %34 = arith.mulf %33, %19 : vector<32x128xf32>
    %cst_15 = arith.constant 6.502500e+00 : f32
    %35 = vector.broadcast %cst_15 : f32 to vector<32x128xf32>
    %36 = arith.addf %34, %35 : vector<32x128xf32>
    %37 = arith.addf %17, %18 : vector<32x128xf32>
    %cst_16 = arith.constant 6.502500e+00 : f32
    %38 = vector.broadcast %cst_16 : f32 to vector<32x128xf32>
    %39 = arith.addf %37, %38 : vector<32x128xf32>
    %40 = arith.divf %36, %39 : vector<32x128xf32>
    %41 = arith.mulf %32, %40 : vector<32x128xf32>
    %42 = vector.shape_cast %41 : vector<32x128xf32> to vector<1x32x128xf32>
    %cst_17 = arith.constant dense<0.000000e+00> : vector<1xf32>
    %43 = vector.multi_reduction <add>, %42, %cst_17 [1, 2] : vector<1x32x128xf32> to vector<1xf32>
    %44 = vector.shape_cast %43 : vector<1xf32> to vector<1x1x1xf32>
    %45 = vector.extract %44[0, 0, 0] : f32 from vector<1x1x1xf32>
    %46 = vector.shape_cast %32 : vector<32x128xf32> to vector<1x32x128xf32>
    %cst_18 = arith.constant dense<0.000000e+00> : vector<1xf32>
    %47 = vector.multi_reduction <add>, %46, %cst_18 [1, 2] : vector<1x32x128xf32> to vector<1xf32>
    %48 = vector.shape_cast %47 : vector<1xf32> to vector<1x1x1xf32>
    %49 = vector.extract %48[0, 0, 0] : f32 from vector<1x1x1xf32>
    %c0_19 = arith.constant 0 : index
    %c0_20 = arith.constant 0 : index
    %50 = vector.load %arg9[%c0_19, %c0_20] : memref<32x64xf32, #tpu.memory_space<vmem>>, vector<32x64xf32>
    %c0_21 = arith.constant 0 : index
    %c0_22 = arith.constant 0 : index
    %51 = vector.load %arg10[%c0_21, %c0_22] : memref<128x64xf32, #tpu.memory_space<vmem>>, vector<128x64xf32>
    %52 = tpu.concatenate %1, %3 in 0 : vector<32x128xf32>, vector<32x128xf32> -> vector<64x128xf32>
    %cst_23 = arith.constant dense<0.000000e+00> : vector<32x128xf32>
    %53 = tpu.matmul %50, %52, %cst_23 {dimension_numbers = #tpu.dot_dimension_numbers<[1], [0], [0], [1], [0, 0, 1, 1], [], []>} : vector<32x64xf32>, vector<64x128xf32>, vector<32x128xf32> -> vector<32x128xf32>
    %cst_24 = arith.constant dense<0.000000e+00> : vector<32x64xf32>
    %54 = tpu.matmul %53, %51, %cst_24 {dimension_numbers = #tpu.dot_dimension_numbers<[1], [0], [0], [1], [0, 0, 1, 1], [], []>} : vector<32x128xf32>, vector<128x64xf32>, vector<32x64xf32> -> vector<32x64xf32>
    %55 = vector.extract_strided_slice %54 {offsets = [0, 0], sizes = [16, 64], strides = [1, 1]} : vector<32x64xf32> to vector<16x64xf32>
    %56 = vector.extract_strided_slice %54 {offsets = [16, 0], sizes = [16, 64], strides = [1, 1]} : vector<32x64xf32> to vector<16x64xf32>
    %c0_25 = arith.constant 0 : index
    %c0_26 = arith.constant 0 : index
    %57 = vector.load %arg5[%c0_25, %c0_26] : memref<80x80xf32, #tpu.memory_space<vmem>>, vector<80x80xf32>
    %c0_27 = arith.constant 0 : index
    %c0_28 = arith.constant 0 : index
    %58 = vector.load %arg6[%c0_27, %c0_28] : memref<64x64xf32, #tpu.memory_space<vmem>>, vector<64x64xf32>
    %59 = arith.mulf %55, %55 : vector<16x64xf32>
    %60 = arith.mulf %56, %56 : vector<16x64xf32>
    %61 = arith.mulf %55, %56 : vector<16x64xf32>
    %62 = tpu.concatenate %55, %56, %59, %60, %61 in 0 : vector<16x64xf32>, vector<16x64xf32>, vector<16x64xf32>, vector<16x64xf32>, vector<16x64xf32> -> vector<80x64xf32>
    %cst_29 = arith.constant dense<0.000000e+00> : vector<80x64xf32>
    %63 = tpu.matmul %62, %58, %cst_29 {dimension_numbers = #tpu.dot_dimension_numbers<[1], [0], [0], [1], [0, 0, 1, 1], [], []>} : vector<80x64xf32>, vector<64x64xf32>, vector<80x64xf32> -> vector<80x64xf32>
    %cst_30 = arith.constant dense<0.000000e+00> : vector<80x64xf32>
    %64 = tpu.matmul %57, %63, %cst_30 {dimension_numbers = #tpu.dot_dimension_numbers<[1], [0], [0], [1], [0, 0, 1, 1], [], []>} : vector<80x80xf32>, vector<80x64xf32>, vector<80x64xf32> -> vector<80x64xf32>
    %65 = vector.extract_strided_slice %64 {offsets = [0, 0], sizes = [16, 64], strides = [1, 1]} : vector<80x64xf32> to vector<16x64xf32>
    %66 = vector.extract_strided_slice %64 {offsets = [16, 0], sizes = [16, 64], strides = [1, 1]} : vector<80x64xf32> to vector<16x64xf32>
    %67 = vector.extract_strided_slice %64 {offsets = [32, 0], sizes = [16, 64], strides = [1, 1]} : vector<80x64xf32> to vector<16x64xf32>
    %68 = vector.extract_strided_slice %64 {offsets = [48, 0], sizes = [16, 64], strides = [1, 1]} : vector<80x64xf32> to vector<16x64xf32>
    %69 = vector.extract_strided_slice %64 {offsets = [64, 0], sizes = [16, 64], strides = [1, 1]} : vector<80x64xf32> to vector<16x64xf32>
    %70 = arith.mulf %65, %65 : vector<16x64xf32>
    %71 = arith.mulf %66, %66 : vector<16x64xf32>
    %72 = arith.mulf %65, %66 : vector<16x64xf32>
    %73 = arith.subf %67, %70 : vector<16x64xf32>
    %74 = arith.subf %68, %71 : vector<16x64xf32>
    %75 = arith.subf %69, %72 : vector<16x64xf32>
    %cst_31 = arith.constant 2.000000e+00 : f32
    %76 = vector.broadcast %cst_31 : f32 to vector<16x64xf32>
    %77 = arith.mulf %76, %75 : vector<16x64xf32>
    %cst_32 = arith.constant 5.852250e+01 : f32
    %78 = vector.broadcast %cst_32 : f32 to vector<16x64xf32>
    %79 = arith.addf %77, %78 : vector<16x64xf32>
    %80 = arith.addf %73, %74 : vector<16x64xf32>
    %cst_33 = arith.constant 5.852250e+01 : f32
    %81 = vector.broadcast %cst_33 : f32 to vector<16x64xf32>
    %82 = arith.addf %80, %81 : vector<16x64xf32>
    %cst_34 = arith.constant 1.000000e+00 : f32
    %83 = vector.broadcast %cst_34 : f32 to vector<16x64xf32>
    %84 = arith.divf %83, %82 : vector<16x64xf32>
    %85 = arith.mulf %79, %84 : vector<16x64xf32>
    %cst_35 = arith.constant 2.000000e+00 : f32
    %86 = vector.broadcast %cst_35 : f32 to vector<16x64xf32>
    %87 = arith.mulf %86, %72 : vector<16x64xf32>
    %cst_36 = arith.constant 6.502500e+00 : f32
    %88 = vector.broadcast %cst_36 : f32 to vector<16x64xf32>
    %89 = arith.addf %87, %88 : vector<16x64xf32>
    %90 = arith.addf %70, %71 : vector<16x64xf32>
    %cst_37 = arith.constant 6.502500e+00 : f32
    %91 = vector.broadcast %cst_37 : f32 to vector<16x64xf32>
    %92 = arith.addf %90, %91 : vector<16x64xf32>
    %93 = arith.divf %89, %92 : vector<16x64xf32>
    %94 = arith.mulf %85, %93 : vector<16x64xf32>
    %95 = vector.shape_cast %94 : vector<16x64xf32> to vector<1x16x64xf32>
    %cst_38 = arith.constant dense<0.000000e+00> : vector<1xf32>
    %96 = vector.multi_reduction <add>, %95, %cst_38 [1, 2] : vector<1x16x64xf32> to vector<1xf32>
    %97 = vector.shape_cast %96 : vector<1xf32> to vector<1x1x1xf32>
    %98 = vector.extract %97[0, 0, 0] : f32 from vector<1x1x1xf32>
    %99 = vector.shape_cast %85 : vector<16x64xf32> to vector<1x16x64xf32>
    %cst_39 = arith.constant dense<0.000000e+00> : vector<1xf32>
    %100 = vector.multi_reduction <add>, %99, %cst_39 [1, 2] : vector<1x16x64xf32> to vector<1xf32>
    %101 = vector.shape_cast %100 : vector<1xf32> to vector<1x1x1xf32>
    %102 = vector.extract %101[0, 0, 0] : f32 from vector<1x1x1xf32>
    %c0_40 = arith.constant 0 : index
    %c0_41 = arith.constant 0 : index
    %103 = vector.load %arg11[%c0_40, %c0_41] : memref<16x32xf32, #tpu.memory_space<vmem>>, vector<16x32xf32>
    %c0_42 = arith.constant 0 : index
    %c0_43 = arith.constant 0 : index
    %104 = vector.load %arg12[%c0_42, %c0_43] : memref<64x32xf32, #tpu.memory_space<vmem>>, vector<64x32xf32>
    %105 = tpu.concatenate %55, %56 in 0 : vector<16x64xf32>, vector<16x64xf32> -> vector<32x64xf32>
    %cst_44 = arith.constant dense<0.000000e+00> : vector<16x64xf32>
    %106 = tpu.matmul %103, %105, %cst_44 {dimension_numbers = #tpu.dot_dimension_numbers<[1], [0], [0], [1], [0, 0, 1, 1], [], []>} : vector<16x32xf32>, vector<32x64xf32>, vector<16x64xf32> -> vector<16x64xf32>
    %cst_45 = arith.constant dense<0.000000e+00> : vector<16x32xf32>
    %107 = tpu.matmul %106, %104, %cst_45 {dimension_numbers = #tpu.dot_dimension_numbers<[1], [0], [0], [1], [0, 0, 1, 1], [], []>} : vector<16x64xf32>, vector<64x32xf32>, vector<16x32xf32> -> vector<16x32xf32>
    %108 = vector.extract_strided_slice %107 {offsets = [0, 0], sizes = [8, 32], strides = [1, 1]} : vector<16x32xf32> to vector<8x32xf32>
    %109 = vector.extract_strided_slice %107 {offsets = [8, 0], sizes = [8, 32], strides = [1, 1]} : vector<16x32xf32> to vector<8x32xf32>
    %c0_46 = arith.constant 0 : index
    %c0_47 = arith.constant 0 : index
    %110 = vector.load %arg7[%c0_46, %c0_47] : memref<40x40xf32, #tpu.memory_space<vmem>>, vector<40x40xf32>
    %c0_48 = arith.constant 0 : index
    %c0_49 = arith.constant 0 : index
    %111 = vector.load %arg8[%c0_48, %c0_49] : memref<32x32xf32, #tpu.memory_space<vmem>>, vector<32x32xf32>
    %112 = arith.mulf %108, %108 : vector<8x32xf32>
    %113 = arith.mulf %109, %109 : vector<8x32xf32>
    %114 = arith.mulf %108, %109 : vector<8x32xf32>
    %115 = tpu.concatenate %108, %109, %112, %113, %114 in 0 : vector<8x32xf32>, vector<8x32xf32>, vector<8x32xf32>, vector<8x32xf32>, vector<8x32xf32> -> vector<40x32xf32>
    %cst_50 = arith.constant dense<0.000000e+00> : vector<40x32xf32>
    %116 = tpu.matmul %115, %111, %cst_50 {dimension_numbers = #tpu.dot_dimension_numbers<[1], [0], [0], [1], [0, 0, 1, 1], [], []>} : vector<40x32xf32>, vector<32x32xf32>, vector<40x32xf32> -> vector<40x32xf32>
    %cst_51 = arith.constant dense<0.000000e+00> : vector<40x32xf32>
    %117 = tpu.matmul %110, %116, %cst_51 {dimension_numbers = #tpu.dot_dimension_numbers<[1], [0], [0], [1], [0, 0, 1, 1], [], []>} : vector<40x40xf32>, vector<40x32xf32>, vector<40x32xf32> -> vector<40x32xf32>
    %118 = vector.extract_strided_slice %117 {offsets = [0, 0], sizes = [8, 32], strides = [1, 1]} : vector<40x32xf32> to vector<8x32xf32>
    %119 = vector.extract_strided_slice %117 {offsets = [8, 0], sizes = [8, 32], strides = [1, 1]} : vector<40x32xf32> to vector<8x32xf32>
    %120 = vector.extract_strided_slice %117 {offsets = [16, 0], sizes = [8, 32], strides = [1, 1]} : vector<40x32xf32> to vector<8x32xf32>
    %121 = vector.extract_strided_slice %117 {offsets = [24, 0], sizes = [8, 32], strides = [1, 1]} : vector<40x32xf32> to vector<8x32xf32>
    %122 = vector.extract_strided_slice %117 {offsets = [32, 0], sizes = [8, 32], strides = [1, 1]} : vector<40x32xf32> to vector<8x32xf32>
    %123 = arith.mulf %118, %118 : vector<8x32xf32>
    %124 = arith.mulf %119, %119 : vector<8x32xf32>
    %125 = arith.mulf %118, %119 : vector<8x32xf32>
    %126 = arith.subf %120, %123 : vector<8x32xf32>
    %127 = arith.subf %121, %124 : vector<8x32xf32>
    %128 = arith.subf %122, %125 : vector<8x32xf32>
    %cst_52 = arith.constant 2.000000e+00 : f32
    %129 = vector.broadcast %cst_52 : f32 to vector<8x32xf32>
    %130 = arith.mulf %129, %128 : vector<8x32xf32>
    %cst_53 = arith.constant 5.852250e+01 : f32
    %131 = vector.broadcast %cst_53 : f32 to vector<8x32xf32>
    %132 = arith.addf %130, %131 : vector<8x32xf32>
    %133 = arith.addf %126, %127 : vector<8x32xf32>
    %cst_54 = arith.constant 5.852250e+01 : f32
    %134 = vector.broadcast %cst_54 : f32 to vector<8x32xf32>
    %135 = arith.addf %133, %134 : vector<8x32xf32>
    %cst_55 = arith.constant 1.000000e+00 : f32
    %136 = vector.broadcast %cst_55 : f32 to vector<8x32xf32>
    %137 = arith.divf %136, %135 : vector<8x32xf32>
    %138 = arith.mulf %132, %137 : vector<8x32xf32>
    %cst_56 = arith.constant 2.000000e+00 : f32
    %139 = vector.broadcast %cst_56 : f32 to vector<8x32xf32>
    %140 = arith.mulf %139, %125 : vector<8x32xf32>
    %cst_57 = arith.constant 6.502500e+00 : f32
    %141 = vector.broadcast %cst_57 : f32 to vector<8x32xf32>
    %142 = arith.addf %140, %141 : vector<8x32xf32>
    %143 = arith.addf %123, %124 : vector<8x32xf32>
    %cst_58 = arith.constant 6.502500e+00 : f32
    %144 = vector.broadcast %cst_58 : f32 to vector<8x32xf32>
    %145 = arith.addf %143, %144 : vector<8x32xf32>
    %146 = arith.divf %142, %145 : vector<8x32xf32>
    %147 = arith.mulf %138, %146 : vector<8x32xf32>
    %148 = vector.shape_cast %147 : vector<8x32xf32> to vector<1x8x32xf32>
    %cst_59 = arith.constant dense<0.000000e+00> : vector<1xf32>
    %149 = vector.multi_reduction <add>, %148, %cst_59 [1, 2] : vector<1x8x32xf32> to vector<1xf32>
    %150 = vector.shape_cast %149 : vector<1xf32> to vector<1x1x1xf32>
    %151 = vector.extract %150[0, 0, 0] : f32 from vector<1x1x1xf32>
    %152 = vector.shape_cast %138 : vector<8x32xf32> to vector<1x8x32xf32>
    %cst_60 = arith.constant dense<0.000000e+00> : vector<1xf32>
    %153 = vector.multi_reduction <add>, %152, %cst_60 [1, 2] : vector<1x8x32xf32> to vector<1xf32>
    %154 = vector.shape_cast %153 : vector<1xf32> to vector<1x1x1xf32>
    %155 = vector.extract %154[0, 0, 0] : f32 from vector<1x1x1xf32>
    %156 = tpu.iota {dimensions = array<i32: 2>} : vector<1x1x6xi32>
    %cst_61 = arith.constant 0.000000e+00 : f32
    %157 = vector.broadcast %cst_61 : f32 to vector<1x1x6xf32>
    %c0_i32 = arith.constant 0 : i32
    %158 = vector.broadcast %c0_i32 : i32 to vector<1x1x6xi32>
    %159 = arith.cmpi eq, %156, %158 : vector<1x1x6xi32>
    %160 = vector.broadcast %45 : f32 to vector<1x1x6xf32>
    %161 = arith.select %159, %160, %157 : vector<1x1x6xi1>, vector<1x1x6xf32>
    %c1_i32 = arith.constant 1 : i32
    %162 = vector.broadcast %c1_i32 : i32 to vector<1x1x6xi32>
    %163 = arith.cmpi eq, %156, %162 : vector<1x1x6xi32>
    %164 = vector.broadcast %49 : f32 to vector<1x1x6xf32>
    %165 = arith.select %163, %164, %161 : vector<1x1x6xi1>, vector<1x1x6xf32>
    %c2_i32 = arith.constant 2 : i32
    %166 = vector.broadcast %c2_i32 : i32 to vector<1x1x6xi32>
    %167 = arith.cmpi eq, %156, %166 : vector<1x1x6xi32>
    %168 = vector.broadcast %98 : f32 to vector<1x1x6xf32>
    %169 = arith.select %167, %168, %165 : vector<1x1x6xi1>, vector<1x1x6xf32>
    %c3_i32 = arith.constant 3 : i32
    %170 = vector.broadcast %c3_i32 : i32 to vector<1x1x6xi32>
    %171 = arith.cmpi eq, %156, %170 : vector<1x1x6xi32>
    %172 = vector.broadcast %102 : f32 to vector<1x1x6xf32>
    %173 = arith.select %171, %172, %169 : vector<1x1x6xi1>, vector<1x1x6xf32>
    %c4_i32 = arith.constant 4 : i32
    %174 = vector.broadcast %c4_i32 : i32 to vector<1x1x6xi32>
    %175 = arith.cmpi eq, %156, %174 : vector<1x1x6xi32>
    %176 = vector.broadcast %151 : f32 to vector<1x1x6xf32>
    %177 = arith.select %175, %176, %173 : vector<1x1x6xi1>, vector<1x1x6xf32>
    %c5_i32 = arith.constant 5 : i32
    %178 = vector.broadcast %c5_i32 : i32 to vector<1x1x6xi32>
    %179 = arith.cmpi eq, %156, %178 : vector<1x1x6xi32>
    %180 = vector.broadcast %155 : f32 to vector<1x1x6xf32>
    %181 = arith.select %179, %180, %177 : vector<1x1x6xi1>, vector<1x1x6xf32>
    %c0_62 = arith.constant 0 : index
    %c0_63 = arith.constant 0 : index
    %c0_64 = arith.constant 0 : index
    %182 = vector.load %arg13[%c0_62, %c0_63, %c0_64] : memref<1x1x6xf32, #tpu.memory_space<vmem>>, vector<1x1x6xf32>
    tpu.vector_store %arg13[%c0_62, %c0_63, %c0_64], %181 {strides = array<i32>} : memref<1x1x6xf32, #tpu.memory_space<vmem>>, vector<1x1x6xf32>,
    return
  }
  func.func @transform_0(%arg0: i32) -> (i32, i32, i32) {
    %c0_i32 = arith.constant 0 : i32
    %c0_i32_0 = arith.constant 0 : i32
    %c0_i32_1 = arith.constant 0 : i32
    return %arg0, %c0_i32, %c0_i32_0 : i32, i32, i32
  }
  func.func @transform_1(%arg0: i32) -> (i32, i32, i32) {
    %c0_i32 = arith.constant 0 : i32
    %c0_i32_0 = arith.constant 0 : i32
    %c0_i32_1 = arith.constant 0 : i32
    return %arg0, %c0_i32, %c0_i32_0 : i32, i32, i32
  }
  func.func @transform_2(%arg0: i32) -> (i32, i32) {
    %c0_i32 = arith.constant 0 : i32
    %c0_i32_0 = arith.constant 0 : i32
    %c0_i32_1 = arith.constant 0 : i32
    return %c0_i32, %c0_i32_0 : i32, i32
  }
  func.func @transform_3(%arg0: i32) -> (i32, i32) {
    %c0_i32 = arith.constant 0 : i32
    %c0_i32_0 = arith.constant 0 : i32
    %c0_i32_1 = arith.constant 0 : i32
    return %c0_i32, %c0_i32_0 : i32, i32
  }
  func.func @transform_4(%arg0: i32) -> (i32, i32) {
    %c0_i32 = arith.constant 0 : i32
    %c0_i32_0 = arith.constant 0 : i32
    %c0_i32_1 = arith.constant 0 : i32
    return %c0_i32, %c0_i32_0 : i32, i32
  }
  func.func @transform_5(%arg0: i32) -> (i32, i32) {
    %c0_i32 = arith.constant 0 : i32
    %c0_i32_0 = arith.constant 0 : i32
    %c0_i32_1 = arith.constant 0 : i32
    return %c0_i32, %c0_i32_0 : i32, i32
  }
  func.func @transform_6(%arg0: i32) -> (i32, i32) {
    %c0_i32 = arith.constant 0 : i32
    %c0_i32_0 = arith.constant 0 : i32
    %c0_i32_1 = arith.constant 0 : i32
    return %c0_i32, %c0_i32_0 : i32, i32
  }
  func.func @transform_7(%arg0: i32) -> (i32, i32) {
    %c0_i32 = arith.constant 0 : i32
    %c0_i32_0 = arith.constant 0 : i32
    %c0_i32_1 = arith.constant 0 : i32
    return %c0_i32, %c0_i32_0 : i32, i32
  }
  func.func @transform_8(%arg0: i32) -> (i32, i32) {
    %c0_i32 = arith.constant 0 : i32
    %c0_i32_0 = arith.constant 0 : i32
    %c0_i32_1 = arith.constant 0 : i32
    return %c0_i32, %c0_i32_0 : i32, i32
  }
  func.func @transform_9(%arg0: i32) -> (i32, i32) {
    %c0_i32 = arith.constant 0 : i32
    %c0_i32_0 = arith.constant 0 : i32
    %c0_i32_1 = arith.constant 0 : i32
    return %c0_i32, %c0_i32_0 : i32, i32
  }
  func.func @transform_10(%arg0: i32) -> (i32, i32) {
    %c0_i32 = arith.constant 0 : i32
    %c0_i32_0 = arith.constant 0 : i32
    %c0_i32_1 = arith.constant 0 : i32
    return %c0_i32, %c0_i32_0 : i32, i32
  }
  func.func @transform_11(%arg0: i32) -> (i32, i32) {
    %c0_i32 = arith.constant 0 : i32
    %c0_i32_0 = arith.constant 0 : i32
    %c0_i32_1 = arith.constant 0 : i32
    return %c0_i32, %c0_i32_0 : i32, i32
  }
  func.func @transform_12(%arg0: i32) -> (i32, i32, i32) {
    %c0_i32 = arith.constant 0 : i32
    %c0_i32_0 = arith.constant 0 : i32
    %c0_i32_1 = arith.constant 0 : i32
    return %arg0, %c0_i32, %c0_i32_0 : i32, i32, i32
  }
}

</mosaic_0001>

<llo_original>
// kernel: ms_ssim_forward.1
$region0: #{ms_ssim_forward.1}
  #allocation0 [shape = 'u32[]', space=smem, size = 0x4, offset = 0x4, fixed_abs, tag = 'smem constant byte address 0x4 - core index']
  #allocation1 [shape = 'u32[144,128]{1,0:T(1,128)}', space=vmem, size = 0x12000, scoped, tag = 'internal scratch']
  %s0 = inlined_call_operand.vmem [shape: f32[2,32,128], index: 0, kind: input, shape index: {}]
  %s1 = inlined_call_operand.vmem [shape: f32[2,32,128], index: 1, kind: input, shape index: {}]
  %s2 = inlined_call_operand.vmem [shape: f32[160,160], index: 2, kind: input, shape index: {}]
  %s3 = inlined_call_operand.vmem [shape: f32[128,128], index: 3, kind: input, shape index: {}]
  %s4 = inlined_call_operand.vmem [shape: f32[80,80], index: 4, kind: input, shape index: {}]
  %s5 = inlined_call_operand.vmem [shape: f32[64,64], index: 5, kind: input, shape index: {}]
  %s6 = inlined_call_operand.vmem [shape: f32[40,40], index: 6, kind: input, shape index: {}]
  %s7 = inlined_call_operand.vmem [shape: f32[32,32], index: 7, kind: input, shape index: {}]
  %s8 = inlined_call_operand.vmem [shape: f32[32,64], index: 8, kind: input, shape index: {}]
  %s9 = inlined_call_operand.vmem [shape: f32[128,64], index: 9, kind: input, shape index: {}]
  %s10 = inlined_call_operand.vmem [shape: f32[16,32], index: 10, kind: input, shape index: {}]
  %s11 = inlined_call_operand.vmem [shape: f32[64,32], index: 11, kind: input, shape index: {}]
  %s12 = inlined_call_operand.vmem [shape: f32[2,1,6], index: 12, kind: output, shape index: {}]
  %s13 = sld [smem:[#allocation0]]
  $region81: #{ms_ssim_forward.1} parent=0
    _
  %s15 = ssub.s32 1, %s13
  %s16 = scalar_select 0, %s15, %s13
  loop: start=0, step=1, limit=4
  $region2: #{ms_ssim_forward.1} parent=0 // loop_pre_header
    _
  $region3: #{ms_ssim_forward.1} parent=0 // loop_header
    %s18 = sphi 0, %s22
    %p19 = scmp.ge.s32.totalorder %s18, 4
    %s28 = sphi 0, %s30
    %s31 = sphi 0, %s28
    %s32 = sphi 0, %s31
    %s48 = sphi 0, %s32
    %s54 = sphi 0, %s56
    %s57 = sphi 0, %s54
    %s58 = sphi 0, %s57
    %s74 = sphi 0, %s58
    %s78 = sphi 0, %s78
    %s80 = sphi 0, %s78
    %s81 = sphi 0, %s80
    %s95 = sphi 0, %s81
    %s99 = sphi 0, %s99
    %s101 = sphi 0, %s99
    %s102 = sphi 0, %s101
    %s116 = sphi 0, %s102
    %s120 = sphi 0, %s120
    %s122 = sphi 0, %s120
    %s123 = sphi 0, %s122
    %s137 = sphi 0, %s123
    %s141 = sphi 0, %s141
    %s143 = sphi 0, %s141
    %s144 = sphi 0, %s143
    %s158 = sphi 0, %s144
    %s162 = sphi 0, %s162
    %s164 = sphi 0, %s162
    %s165 = sphi 0, %s164
    %s179 = sphi 0, %s165
    %s183 = sphi 0, %s183
    %s185 = sphi 0, %s183
    %s186 = sphi 0, %s185
    %s200 = sphi 0, %s186
    %s204 = sphi 0, %s204
    %s206 = sphi 0, %s204
    %s207 = sphi 0, %s206
    %s221 = sphi 0, %s207
    %s225 = sphi 0, %s225
    %s227 = sphi 0, %s225
    %s228 = sphi 0, %s227
    %s242 = sphi 0, %s228
    %s246 = sphi 0, %s246
    %s248 = sphi 0, %s246
    %s249 = sphi 0, %s248
    %s263 = sphi 0, %s249
    %s267 = sphi 0, %s267
    %s269 = sphi 0, %s267
    %s270 = sphi 0, %s269
    %s284 = sphi 0, %s270
    %s290 = sphi 0, %s292
    %s293 = sphi 0, %s290
    %s294 = sphi 0, %s293
    %s310 = sphi 0, %s294
  $region4: #{ms_ssim_forward.1} parent=0 // loop_header_branch
    %21 = sbr.rel (%p19) target = $region8
  $region5: #{ms_ssim_forward.1} parent=0 // loop_body
    %s23 = ssub.s32 %s18, 1
    %s24 = ssub.s32 %s18, 2
    %s25 = sadd.s32 %s18, 1
    %s26 = ssub.s32 %s18, %s25
    %p27 = scmp.eq.s32.totalorder %s26, 0
    %s29 = sadd.s32 %s28, 1
    %s30 = scalar_select %p27, %s28, %s29
    %p33 = pneg %p27
    %p34 = scmp.eq.s32.totalorder %s18, 1
    %p35 = por %p33, %p34
    %p36 = scmp.ne.s32.totalorder %s28, %s31
    %p37 = scmp.eq.s32.totalorder %s18, 0
    %p38 = por %p36, %p37
    %p39 = scmp.ne.s32.totalorder %s28, %s31
    %p40 = scmp.eq.s32.totalorder %s23, 1
    %p41 = por %p39, %p40
    %p42 = scmp.ne.s32.totalorder %s31, %s32
    %p43 = scmp.eq.s32.totalorder %s23, 0
    %p44 = por %p42, %p43
    %p45 = scmp.ne.s32.totalorder %s31, %s32
    %p46 = scmp.eq.s32.totalorder %s24, 1
    %p47 = por %p45, %p46
    %p49 = scmp.ne.s32.totalorder %s32, %s48
    %p50 = scmp.eq.s32.totalorder %s24, 0
    %p51 = por %p49, %p50
    %s52 = ssub.s32 %s18, %s25
    %p53 = scmp.eq.s32.totalorder %s52, 0
    %s55 = sadd.s32 %s54, 1
    %s56 = scalar_select %p53, %s54, %s55
    %p59 = pneg %p53
    %p60 = scmp.eq.s32.totalorder %s18, 1
    %p61 = por %p59, %p60
    %p62 = scmp.ne.s32.totalorder %s54, %s57
    %p63 = scmp.eq.s32.totalorder %s18, 0
    %p64 = por %p62, %p63
    %p65 = scmp.ne.s32.totalorder %s54, %s57
    %p66 = scmp.eq.s32.totalorder %s23, 1
    %p67 = por %p65, %p66
    %p68 = scmp.ne.s32.totalorder %s57, %s58
    %p69 = scmp.eq.s32.totalorder %s23, 0
    %p70 = por %p68, %p69
    %p71 = scmp.ne.s32.totalorder %s57, %s58
    %p72 = scmp.eq.s32.totalorder %s24, 1
    %p73 = por %p71, %p72
    %p75 = scmp.ne.s32.totalorder %s58, %s74
    %p76 = scmp.eq.s32.totalorder %s24, 0
    %p77 = por %p75, %p76
    %s79 = sadd.s32 %s78, 1
    %p82 = scmp.eq.s32.totalorder %s18, 1
    %p83 = scmp.ne.s32.totalorder %s78, %s80
    %p84 = scmp.eq.s32.totalorder %s18, 0
    %p85 = por %p83, %p84
    %p86 = scmp.ne.s32.totalorder %s78, %s80
    %p87 = scmp.eq.s32.totalorder %s23, 1
    %p88 = por %p86, %p87
    %p89 = scmp.ne.s32.totalorder %s80, %s81
    %p90 = scmp.eq.s32.totalorder %s23, 0
    %p91 = por %p89, %p90
    %p92 = scmp.ne.s32.totalorder %s80, %s81
    %p93 = scmp.eq.s32.totalorder %s24, 1
    %p94 = por %p92, %p93
    %p96 = scmp.ne.s32.totalorder %s81, %s95
    %p97 = scmp.eq.s32.totalorder %s24, 0
    %p98 = por %p96, %p97
    %s100 = sadd.s32 %s99, 1
    %p103 = scmp.eq.s32.totalorder %s18, 1
    %p104 = scmp.ne.s32.totalorder %s99, %s101
    %p105 = scmp.eq.s32.totalorder %s18, 0
    %p106 = por %p104, %p105
    %p107 = scmp.ne.s32.totalorder %s99, %s101
    %p108 = scmp.eq.s32.totalorder %s23, 1
    %p109 = por %p107, %p108
    %p110 = scmp.ne.s32.totalorder %s101, %s102
    %p111 = scmp.eq.s32.totalorder %s23, 0
    %p112 = por %p110, %p111
    %p113 = scmp.ne.s32.totalorder %s101, %s102
    %p114 = scmp.eq.s32.totalorder %s24, 1
    %p115 = por %p113, %p114
    %p117 = scmp.ne.s32.totalorder %s102, %s116
    %p118 = scmp.eq.s32.totalorder %s24, 0
    %p119 = por %p117, %p118
    %s121 = sadd.s32 %s120, 1
    %p124 = scmp.eq.s32.totalorder %s18, 1
    %p125 = scmp.ne.s32.totalorder %s120, %s122
    %p126 = scmp.eq.s32.totalorder %s18, 0
    %p127 = por %p125, %p126
    %p128 = scmp.ne.s32.totalorder %s120, %s122
    %p129 = scmp.eq.s32.totalorder %s23, 1
    %p130 = por %p128, %p129
    %p131 = scmp.ne.s32.totalorder %s122, %s123
    %p132 = scmp.eq.s32.totalorder %s23, 0
    %p133 = por %p131, %p132
    %p134 = scmp.ne.s32.totalorder %s122, %s123
    %p135 = scmp.eq.s32.totalorder %s24, 1
    %p136 = por %p134, %p135
    %p138 = scmp.ne.s32.totalorder %s123, %s137
    %p139 = scmp.eq.s32.totalorder %s24, 0
    %p140 = por %p138, %p139
    %s142 = sadd.s32 %s141, 1
    %p145 = scmp.eq.s32.totalorder %s18, 1
    %p146 = scmp.ne.s32.totalorder %s141, %s143
    %p147 = scmp.eq.s32.totalorder %s18, 0
    %p148 = por %p146, %p147
    %p149 = scmp.ne.s32.totalorder %s141, %s143
    %p150 = scmp.eq.s32.totalorder %s23, 1
    %p151 = por %p149, %p150
    %p152 = scmp.ne.s32.totalorder %s143, %s144
    %p153 = scmp.eq.s32.totalorder %s23, 0
    %p154 = por %p152, %p153
    %p155 = scmp.ne.s32.totalorder %s143, %s144
    %p156 = scmp.eq.s32.totalorder %s24, 1
    %p157 = por %p155, %p156
    %p159 = scmp.ne.s32.totalorder %s144, %s158
    %p160 = scmp.eq.s32.totalorder %s24, 0
    %p161 = por %p159, %p160
    %s163 = sadd.s32 %s162, 1
    %p166 = scmp.eq.s32.totalorder %s18, 1
    %p167 = scmp.ne.s32.totalorder %s162, %s164
    %p168 = scmp.eq.s32.totalorder %s18, 0
    %p169 = por %p167, %p168
    %p170 = scmp.ne.s32.totalorder %s162, %s164
    %p171 = scmp.eq.s32.totalorder %s23, 1
    %p172 = por %p170, %p171
    %p173 = scmp.ne.s32.totalorder %s164, %s165
    %p174 = scmp.eq.s32.totalorder %s23, 0
    %p175 = por %p173, %p174
    %p176 = scmp.ne.s32.totalorder %s164, %s165
    %p177 = scmp.eq.s32.totalorder %s24, 1
    %p178 = por %p176, %p177
    %p180 = scmp.ne.s32.totalorder %s165, %s179
    %p181 = scmp.eq.s32.totalorder %s24, 0
    %p182 = por %p180, %p181
    %s184 = sadd.s32 %s183, 1
    %p187 = scmp.eq.s32.totalorder %s18, 1
    %p188 = scmp.ne.s32.totalorder %s183, %s185
    %p189 = scmp.eq.s32.totalorder %s18, 0
    %p190 = por %p188, %p189
    %p191 = scmp.ne.s32.totalorder %s183, %s185
    %p192 = scmp.eq.s32.totalorder %s23, 1
    %p193 = por %p191, %p192
    %p194 = scmp.ne.s32.totalorder %s185, %s186
    %p195 = scmp.eq.s32.totalorder %s23, 0
    %p196 = por %p194, %p195
    %p197 = scmp.ne.s32.totalorder %s185, %s186
    %p198 = scmp.eq.s32.totalorder %s24, 1
    %p199 = por %p197, %p198
    %p201 = scmp.ne.s32.totalorder %s186, %s200
    %p202 = scmp.eq.s32.totalorder %s24, 0
    %p203 = por %p201, %p202
    %s205 = sadd.s32 %s204, 1
    %p208 = scmp.eq.s32.totalorder %s18, 1
    %p209 = scmp.ne.s32.totalorder %s204, %s206
    %p210 = scmp.eq.s32.totalorder %s18, 0
    %p211 = por %p209, %p210
    %p212 = scmp.ne.s32.totalorder %s204, %s206
    %p213 = scmp.eq.s32.totalorder %s23, 1
    %p214 = por %p212, %p213
    %p215 = scmp.ne.s32.totalorder %s206, %s207
    %p216 = scmp.eq.s32.totalorder %s23, 0
    %p217 = por %p215, %p216
    %p218 = scmp.ne.s32.totalorder %s206, %s207
    %p219 = scmp.eq.s32.totalorder %s24, 1
    %p220 = por %p218, %p219
    %p222 = scmp.ne.s32.totalorder %s207, %s221
    %p223 = scmp.eq.s32.totalorder %s24, 0
    %p224 = por %p222, %p223
    %s226 = sadd.s32 %s225, 1
    %p229 = scmp.eq.s32.totalorder %s18, 1
    %p230 = scmp.ne.s32.totalorder %s225, %s227
    %p231 = scmp.eq.s32.totalorder %s18, 0
    %p232 = por %p230, %p231
    %p233 = scmp.ne.s32.totalorder %s225, %s227
    %p234 = scmp.eq.s32.totalorder %s23, 1
    %p235 = por %p233, %p234
    %p236 = scmp.ne.s32.totalorder %s227, %s228
    %p237 = scmp.eq.s32.totalorder %s23, 0
    %p238 = por %p236, %p237
    %p239 = scmp.ne.s32.totalorder %s227, %s228
    %p240 = scmp.eq.s32.totalorder %s24, 1
    %p241 = por %p239, %p240
    %p243 = scmp.ne.s32.totalorder %s228, %s242
    %p244 = scmp.eq.s32.totalorder %s24, 0
    %p245 = por %p243, %p244
    %s247 = sadd.s32 %s246, 1
    %p250 = scmp.eq.s32.totalorder %s18, 1
    %p251 = scmp.ne.s32.totalorder %s246, %s248
    %p252 = scmp.eq.s32.totalorder %s18, 0
    %p253 = por %p251, %p252
    %p254 = scmp.ne.s32.totalorder %s246, %s248
    %p255 = scmp.eq.s32.totalorder %s23, 1
    %p256 = por %p254, %p255
    %p257 = scmp.ne.s32.totalorder %s248, %s249
    %p258 = scmp.eq.s32.totalorder %s23, 0
    %p259 = por %p257, %p258
    %p260 = scmp.ne.s32.totalorder %s248, %s249
    %p261 = scmp.eq.s32.totalorder %s24, 1
    %p262 = por %p260, %p261
    %p264 = scmp.ne.s32.totalorder %s249, %s263
    %p265 = scmp.eq.s32.totalorder %s24, 0
    %p266 = por %p264, %p265
    %s268 = sadd.s32 %s267, 1
    %p271 = scmp.eq.s32.totalorder %s18, 1
    %p272 = scmp.ne.s32.totalorder %s267, %s269
    %p273 = scmp.eq.s32.totalorder %s18, 0
    %p274 = por %p272, %p273
    %p275 = scmp.ne.s32.totalorder %s267, %s269
    %p276 = scmp.eq.s32.totalorder %s23, 1
    %p277 = por %p275, %p276
    %p278 = scmp.ne.s32.totalorder %s269, %s270
    %p279 = scmp.eq.s32.totalorder %s23, 0
    %p280 = por %p278, %p279
    %p281 = scmp.ne.s32.totalorder %s269, %s270
    %p282 = scmp.eq.s32.totalorder %s24, 1
    %p283 = por %p281, %p282
    %p285 = scmp.ne.s32.totalorder %s270, %s284
    %p286 = scmp.eq.s32.totalorder %s24, 0
    %p287 = por %p285, %p286
    %s288 = ssub.s32 %s18, %s25
    %p289 = scmp.eq.s32.totalorder %s288, 0
    %s291 = sadd.s32 %s290, 1
    %s292 = scalar_select %p289, %s290, %s291
    %p295 = pneg %p289
    %p296 = scmp.eq.s32.totalorder %s18, 1
    %p297 = por %p295, %p296
    %p298 = scmp.ne.s32.totalorder %s290, %s293
    %p299 = scmp.eq.s32.totalorder %s18, 0
    %p300 = por %p298, %p299
    %p301 = scmp.ne.s32.totalorder %s290, %s293
    %p302 = scmp.eq.s32.totalorder %s23, 1
    %p303 = por %p301, %p302
    %p304 = scmp.ne.s32.totalorder %s293, %s294
    %p305 = scmp.eq.s32.totalorder %s23, 0
    %p306 = por %p304, %p305
    %p307 = scmp.ne.s32.totalorder %s293, %s294
    %p308 = scmp.eq.s32.totalorder %s24, 1
    %p309 = por %p307, %p308
    %p311 = scmp.ne.s32.totalorder %s294, %s310
    %p312 = scmp.eq.s32.totalorder %s24, 0
    %p313 = por %p311, %p312
    %p314 = scmp.le.s32.totalorder 1, %s18
    %p315 = scmp.lt.s32.totalorder %s18, 3
    %p316 = pnand %p314, %p315
    %p317 = pneg %p316
    // Predicated region
    $region9: #{ms_ssim_forward.1} parent=5 // pred_check
      _
    $region10: #{ms_ssim_forward.1} parent=5 // pred_check_branch
      %319 = sbr.rel (%p316) target = $region12
    $region11: #{ms_ssim_forward.1} parent=5 // pred_region
      %s320 = ssub.s32 %s18, 1
      // Predicated region
      $region13: #{ms_ssim_forward.1} parent=11 // pred_check
        %p321 = pneg %p91
      $region14: #{ms_ssim_forward.1} parent=11 // pred_check_branch
        %323 = sbr.rel (%p321) target = $region16
      $region15: #{ms_ssim_forward.1} parent=11 // pred_region
        _
      $region16: #{ms_ssim_forward.1} parent=11 // pred_fallthru
        _
      // Predicated region
      $region17: #{ms_ssim_forward.1} parent=11 // pred_check
        %p324 = pneg %p112
      $region18: #{ms_ssim_forward.1} parent=11 // pred_check_branch
        %326 = sbr.rel (%p324) target = $region20
      $region19: #{ms_ssim_forward.1} parent=11 // pred_region
        _
      $region20: #{ms_ssim_forward.1} parent=11 // pred_fallthru
        _
      // Predicated region
      $region21: #{ms_ssim_forward.1} parent=11 // pred_check
        %p327 = pneg %p133
      $region22: #{ms_ssim_forward.1} parent=11 // pred_check_branch
        %329 = sbr.rel (%p327) target = $region24
      $region23: #{ms_ssim_forward.1} parent=11 // pred_region
        _
      $region24: #{ms_ssim_forward.1} parent=11 // pred_fallthru
        _
      // Predicated region
      $region25: #{ms_ssim_forward.1} parent=11 // pred_check
        %p330 = pneg %p154
      $region26: #{ms_ssim_forward.1} parent=11 // pred_check_branch
        %332 = sbr.rel (%p330) target = $region28
      $region27: #{ms_ssim_forward.1} parent=11 // pred_region
        _
      $region28: #{ms_ssim_forward.1} parent=11 // pred_fallthru
        _
      // Predicated region
      $region29: #{ms_ssim_forward.1} parent=11 // pred_check
        %p333 = pneg %p175
      $region30: #{ms_ssim_forward.1} parent=11 // pred_check_branch
        %335 = sbr.rel (%p333) target = $region32
      $region31: #{ms_ssim_forward.1} parent=11 // pred_region
        _
      $region32: #{ms_ssim_forward.1} parent=11 // pred_fallthru
        _
      // Predicated region
      $region33: #{ms_ssim_forward.1} parent=11 // pred_check
        %p336 = pneg %p196
      $region34: #{ms_ssim_forward.1} parent=11 // pred_check_branch
        %338 = sbr.rel (%p336) target = $region36
      $region35: #{ms_ssim_forward.1} parent=11 // pred_region
        _
      $region36: #{ms_ssim_forward.1} parent=11 // pred_fallthru
        _
      // Predicated region
      $region37: #{ms_ssim_forward.1} parent=11 // pred_check
        %p339 = pneg %p217
      $region38: #{ms_ssim_forward.1} parent=11 // pred_check_branch
        %341 = sbr.rel (%p339) target = $region40
      $region39: #{ms_ssim_forward.1} parent=11 // pred_region
        _
      $region40: #{ms_ssim_forward.1} parent=11 // pred_fallthru
        _
      // Predicated region
      $region41: #{ms_ssim_forward.1} parent=11 // pred_check
        %p342 = pneg %p238
      $region42: #{ms_ssim_forward.1} parent=11 // pred_check_branch
        %344 = sbr.rel (%p342) target = $region44
      $region43: #{ms_ssim_forward.1} parent=11 // pred_region
        _
      $region44: #{ms_ssim_forward.1} parent=11 // pred_fallthru
        _
      // Predicated region
      $region45: #{ms_ssim_forward.1} parent=11 // pred_check
        %p345 = pneg %p259
      $region46: #{ms_ssim_forward.1} parent=11 // pred_check_branch
        %347 = sbr.rel (%p345) target = $region48
      $region47: #{ms_ssim_forward.1} parent=11 // pred_region
        _
      $region48: #{ms_ssim_forward.1} parent=11 // pred_fallthru
        _
      // Predicated region
      $region49: #{ms_ssim_forward.1} parent=11 // pred_check
        %p348 = pneg %p280
      $region50: #{ms_ssim_forward.1} parent=11 // pred_check_branch
        %350 = sbr.rel (%p348) target = $region52
      $region51: #{ms_ssim_forward.1} parent=11 // pred_region
        _
      $region52: #{ms_ssim_forward.1} parent=11 // pred_fallthru
        _
    $region12: #{ms_ssim_forward.1} parent=5 // pred_fallthru
      _
    %p351 = scmp.lt.s32.totalorder %s18, 2
    // Predicated region
    $region53: #{ms_ssim_forward.1} parent=5 // pred_check
      %p352 = pneg %p351
    $region54: #{ms_ssim_forward.1} parent=5 // pred_check_branch
      %354 = sbr.rel (%p352) target = $region56
    $region55: #{ms_ssim_forward.1} parent=5 // pred_region
      // Predicated region
      $region57: #{ms_ssim_forward.1} parent=55 // pred_check
        %p355 = pneg %p38
      $region58: #{ms_ssim_forward.1} parent=55 // pred_check_branch
        %357 = sbr.rel (%p355) target = $region60
      $region59: #{ms_ssim_forward.1} parent=55 // pred_region
        %p358 = scmp.lt.s32.totalorder %s18, 1
        %s359 = scalar_select %p358, %s18, 1
        %s360 = smul.addr %s359, 4
        %s361 = smul.addr %s360, 8
        %s362 = scalar_lea.vmem %s0, %s361
      $region60: #{ms_ssim_forward.1} parent=55 // pred_fallthru
        _
      // Predicated region
      $region61: #{ms_ssim_forward.1} parent=55 // pred_check
        %p363 = pneg %p64
      $region62: #{ms_ssim_forward.1} parent=55 // pred_check_branch
        %365 = sbr.rel (%p363) target = $region64
      $region63: #{ms_ssim_forward.1} parent=55 // pred_region
        %p366 = scmp.lt.s32.totalorder %s18, 1
        %s367 = scalar_select %p366, %s18, 1
        %s368 = smul.addr %s367, 4
        %s369 = smul.addr %s368, 8
        %s370 = scalar_lea.vmem %s1, %s369
      $region64: #{ms_ssim_forward.1} parent=55 // pred_fallthru
        _
    $region56: #{ms_ssim_forward.1} parent=5 // pred_fallthru
      _
    %p371 = scmp.le.s32.totalorder 1, %s18
    %p372 = scmp.lt.s32.totalorder %s18, 3
    %p373 = pnand %p371, %p372
    %p374 = pneg %p373
    // Predicated region
    $region65: #{ms_ssim_forward.1} parent=5 // pred_check
      _
    $region66: #{ms_ssim_forward.1} parent=5 // pred_check_branch
      %376 = sbr.rel (%p373) target = $region68
    $region67: #{ms_ssim_forward.1} parent=5 // pred_region
      %s377 = ssub.s32 %s18, 1
      %p378 = scmp.lt.s32.totalorder %s23, 1
      %s379 = scalar_select %p378, %s23, 1
      %s380 = smul.addr %s379, 4
      %s381 = smul.addr %s380, 8
      %s382 = scalar_lea.vmem %s0, %s381
      %p383 = pneg %p44
      %p384 = pneg %p41
      %p385 = scmp.lt.s32.totalorder %s23, 1
      %s386 = scalar_select %p385, %s23, 1
      %s387 = smul.addr %s386, 4
      %s388 = smul.addr %s387, 8
      %s389 = scalar_lea.vmem %s1, %s388
      %p390 = pneg %p70
      %p391 = pneg %p67
      %p392 = pneg %p91
      %p393 = pneg %p88
      %p394 = pneg %p112
      %p395 = pneg %p109
      %p396 = pneg %p133
      %p397 = pneg %p130
      %p398 = pneg %p154
      %p399 = pneg %p151
      %p400 = pneg %p175
      %p401 = pneg %p172
      %p402 = pneg %p196
      %p403 = pneg %p193
      %p404 = pneg %p217
      %p405 = pneg %p214
      %p406 = pneg %p238
      %p407 = pneg %p235
      %p408 = pneg %p259
      %p409 = pneg %p256
      %p410 = pneg %p280
      %p411 = pneg %p277
      %p412 = pneg %p306
      %p413 = pneg %p303
      %p414 = scmp.lt.s32.totalorder %s23, 1
      %s415 = scalar_select %p414, %s23, 1
      %s416 = scalar_lea.vmem %s12, %s415
      %p417 = scmp.lt.s32.totalorder %s23, 1
      %s418 = scalar_select %p417, %s23, 1
      %s419 = smul.addr %s418, 4
      %s420 = smul.addr %s419, 8
      %s421 = scalar_lea.vmem %s0, %s420
      %p422 = scmp.lt.s32.totalorder %s23, 1
      %s423 = scalar_select %p422, %s23, 1
      %s424 = smul.addr %s423, 4
      %s425 = smul.addr %s424, 8
      %s426 = scalar_lea.vmem %s1, %s425
      %p427 = scmp.lt.s32.totalorder %s23, 1
      %s428 = scalar_select %p427, %s23, 1
      %s429 = scalar_lea.vmem %s12, %s428
      %v430 = vld [vmem:[%s421] sm:$0xff]
      %v431 = vld [vmem:[%s421 + $0x8] sm:$0xff]
      %v432 = vld [vmem:[%s421 + $0x10] sm:$0xff]
      %v433 = vld [vmem:[%s421 + $0x18] sm:$0xff]
      %v434 = vld [vmem:[%s426] sm:$0xff]
      %v435 = vld [vmem:[%s426 + $0x8] sm:$0xff]
      %v436 = vld [vmem:[%s426 + $0x10] sm:$0xff]
      %v437 = vld [vmem:[%s426 + $0x18] sm:$0xff]
      %v438 = vld [vmem:[%s2] sm:$0xff]
      %v439 = vld [vmem:[%s2 + $0x8] sm:$0xff]
      %v440 = vld [vmem:[%s2 + $0x10] sm:$0xff]
      %v441 = vld [vmem:[%s2 + $0x18] sm:$0xff]
      %v442 = vld [vmem:[%s2 + $0x20] sm:$0xff]
      %v443 = vld [vmem:[%s2 + $0x28] sm:$0xff]
      %v444 = vld [vmem:[%s2 + $0x30] sm:$0xff]
      %v445 = vld [vmem:[%s2 + $0x38] sm:$0xff]
      %v446 = vld [vmem:[%s2 + $0x40] sm:$0xff]
      %v447 = vld [vmem:[%s2 + $0x48] sm:$0xff]
      %v448 = vld [vmem:[%s2 + $0x50] sm:$0xff]
      %v449 = vld [vmem:[%s2 + $0x58] sm:$0xff]
      %v450 = vld [vmem:[%s2 + $0x60] sm:$0xff]
      %v451 = vld [vmem:[%s2 + $0x68] sm:$0xff]
      %v452 = vld [vmem:[%s2 + $0x70] sm:$0xff]
      %v453 = vld [vmem:[%s2 + $0x78] sm:$0xff]
      %v454 = vld [vmem:[%s2 + $0x80] sm:$0xff]
      %v455 = vld [vmem:[%s2 + $0x88] sm:$0xff]
      %v456 = vld [vmem:[%s2 + $0x90] sm:$0xff]
      %v457 = vld [vmem:[%s2 + $0x98] sm:$0xff]
      %v458 = vld [vmem:[%s2 + $0xa0] sm:$0xff]
      %v459 = vld [vmem:[%s2 + $0xa8] sm:$0xff]
      %v460 = vld [vmem:[%s2 + $0xb0] sm:$0xff]
      %v461 = vld [vmem:[%s2 + $0xb8] sm:$0xff]
      %v462 = vld [vmem:[%s2 + $0xc0] sm:$0xff]
      %v463 = vld [vmem:[%s2 + $0xc8] sm:$0xff]
      %v464 = vld [vmem:[%s2 + $0xd0] sm:$0xff]
      %v465 = vld [vmem:[%s2 + $0xd8] sm:$0xff]
      %v466 = vld [vmem:[%s2 + $0xe0] sm:$0xff]
      %v467 = vld [vmem:[%s2 + $0xe8] sm:$0xff]
      %v468 = vld [vmem:[%s2 + $0xf0] sm:$0xff]
      %v469 = vld [vmem:[%s2 + $0xf8] sm:$0xff]
      %v470 = vld [vmem:[%s2 + $0x100] sm:$0xff]
      %v471 = vld [vmem:[%s2 + $0x108] sm:$0xff]
      %v472 = vld [vmem:[%s2 + $0x110] sm:$0xff]
      %v473 = vld [vmem:[%s2 + $0x118] sm:$0xff]
      %v474 = vld [vmem:[%s2 + $0x120] sm:$0xff]
      %v475 = vld [vmem:[%s2 + $0x128] sm:$0xff]
      %v476 = vld [vmem:[%s2 + $0x130] sm:$0xff]
      %v477 = vld [vmem:[%s2 + $0x138] sm:$0xff]
      %v478 = vld [vmem:[%s3] sm:$0xff]
      %v479 = vld [vmem:[%s3 + $0x8] sm:$0xff]
      %v480 = vld [vmem:[%s3 + $0x10] sm:$0xff]
      %v481 = vld [vmem:[%s3 + $0x18] sm:$0xff]
      %v482 = vld [vmem:[%s3 + $0x20] sm:$0xff]
      %v483 = vld [vmem:[%s3 + $0x28] sm:$0xff]
      %v484 = vld [vmem:[%s3 + $0x30] sm:$0xff]
      %v485 = vld [vmem:[%s3 + $0x38] sm:$0xff]
      %v486 = vld [vmem:[%s3 + $0x40] sm:$0xff]
      %v487 = vld [vmem:[%s3 + $0x48] sm:$0xff]
      %v488 = vld [vmem:[%s3 + $0x50] sm:$0xff]
      %v489 = vld [vmem:[%s3 + $0x58] sm:$0xff]
      %v490 = vld [vmem:[%s3 + $0x60] sm:$0xff]
      %v491 = vld [vmem:[%s3 + $0x68] sm:$0xff]
      %v492 = vld [vmem:[%s3 + $0x70] sm:$0xff]
      %v493 = vld [vmem:[%s3 + $0x78] sm:$0xff]
      %v494 = vmul.f32 %v430, %v430
      %v495 = vmul.f32 %v431, %v431
      %v496 = vmul.f32 %v432, %v432
      %v497 = vmul.f32 %v433, %v433
      %v498 = vmul.f32 %v434, %v434
      %v499 = vmul.f32 %v435, %v435
      %v500 = vmul.f32 %v436, %v436
      %v501 = vmul.f32 %v437, %v437
      %v502 = vmul.f32 %v430, %v434
      %v503 = vmul.f32 %v431, %v435
      %v504 = vmul.f32 %v432, %v436
      %v505 = vmul.f32 %v433, %v437
      %506 = vmatprep.subr.mxu0 0.0
      %507 = vmatpush1.msra.mxu0 %v478
      %508 = vmatprep.subr.mxu0 0.0
      %509 = vmatpush1.msra.mxu0 %v479
      %510 = vmatprep.subr.mxu0 0.0
      %511 = vmatpush1.msra.mxu0 %v480
      %512 = vmatprep.subr.mxu0 0.0
      %513 = vmatpush1.msra.mxu0 %v481
      %514 = vmatprep.subr.mxu0 0.0
      %515 = vmatpush1.msra.mxu0 %v482
      %516 = vmatprep.subr.mxu0 0.0
      %517 = vmatpush1.msra.mxu0 %v483
      %518 = vmatprep.subr.mxu0 0.0
      %519 = vmatpush1.msra.mxu0 %v484
      %520 = vmatprep.subr.mxu0 0.0
      %521 = vmatpush1.msra.mxu0 %v485
      %522 = vmatprep.subr.mxu0 0.0
      %523 = vmatpush1.msra.mxu0 %v486
      %524 = vmatprep.subr.mxu0 0.0
      %525 = vmatpush1.msra.mxu0 %v487
      %526 = vmatprep.subr.mxu0 0.0
      %527 = vmatpush1.msra.mxu0 %v488
      %528 = vmatprep.subr.mxu0 0.0
      %529 = vmatpush1.msra.mxu0 %v489
      %530 = vmatprep.subr.mxu0 0.0
      %531 = vmatpush1.msra.mxu0 %v490
      %532 = vmatprep.subr.mxu0 0.0
      %533 = vmatpush1.msra.mxu0 %v491
      %534 = vmatprep.subr.mxu0 0.0
      %535 = vmatpush1.msra.mxu0 %v492
      %536 = vmatprep.subr.mxu0 0.0
      %537 = vmatpush1.msra.mxu0 %v493
      %538 = vmatprep.subr.mxu0 0.0
      %539 = vmatpush1.msra.mxu0 0.0
      %540 = vmatprep.subr.mxu0 0.0
      %541 = vmatpush1.msra.mxu0 0.0
      %542 = vmatprep.subr.mxu0 0.0
      %543 = vmatpush1.msra.mxu0 0.0
      %544 = vmatprep.subr.mxu0 0.0
      %545 = vmatpush1.msra.mxu0 0.0
      %546 = vmatprep.subr.mxu0 0.0
      %547 = vmatpush1.msra.mxu0 0.0
      %548 = vmatprep.subr.mxu0 0.0
      %549 = vmatpush1.msra.mxu0 0.0
      %550 = vmatprep.subr.mxu0 0.0
      %551 = vmatpush1.msra.mxu0 0.0
      %552 = vmatprep.subr.mxu0 0.0
      %553 = vmatpush1.msra.mxu0 0.0
      %554 = vmatprep.subr.mxu0 0.0
      %555 = vmatpush1.msra.mxu0 0.0
      %556 = vmatprep.subr.mxu0 0.0
      %557 = vmatpush1.msra.mxu0 0.0
      %558 = vmatprep.subr.mxu0 0.0
      %559 = vmatpush1.msra.mxu0 0.0
      %560 = vmatprep.subr.mxu0 0.0
      %561 = vmatpush1.msra.mxu0 0.0
      %562 = vmatprep.subr.mxu0 0.0
      %563 = vmatpush1.msra.mxu0 0.0
      %564 = vmatprep.subr.mxu0 0.0
      %565 = vmatpush1.msra.mxu0 0.0
      %566 = vmatprep.subr.mxu0 0.0
      %567 = vmatpush1.msra.mxu0 0.0
      %568 = vmatprep.subr.mxu0 0.0
      %569 = vmatpush1.msra.mxu0 0.0
      %570 = vmatprep.mubr.f32.mxu0 0.0
      %571 = vmatmul.mubr.f32.gmra.mrb[0].mxu0 %v430
      %v572 = vpop.f32.mrb[0].mxu0
      %v573 = vadd.f32 0.0, %v572
      %v574 = vpop.f32.mrb[0].mxu0
      %575 = vmatprep.mubr.f32.mxu0 0.0
      %576 = vmatmul.mubr.f32.gmra.mrb[0].mxu0 %v431
      %v577 = vpop.f32.mrb[0].mxu0
      %v578 = vadd.f32 0.0, %v577
      %v579 = vpop.f32.mrb[0].mxu0
      %580 = vmatprep.mubr.f32.mxu0 0.0
      %581 = vmatmul.mubr.f32.gmra.mrb[0].mxu0 %v432
      %v582 = vpop.f32.mrb[0].mxu0
      %v583 = vadd.f32 0.0, %v582
      %v584 = vpop.f32.mrb[0].mxu0
      %585 = vmatprep.mubr.f32.mxu0 0.0
      %586 = vmatmul.mubr.f32.gmra.mrb[0].mxu0 %v433
      %v587 = vpop.f32.mrb[0].mxu0
      %v588 = vadd.f32 0.0, %v587
      %v589 = vpop.f32.mrb[0].mxu0
      %590 = vmatprep.mubr.f32.mxu0 0.0
      %591 = vmatmul.mubr.f32.gmra.mrb[0].mxu0 %v434
      %v592 = vpop.f32.mrb[0].mxu0
      %v593 = vadd.f32 0.0, %v592
      %v594 = vpop.f32.mrb[0].mxu0
      %595 = vmatprep.mubr.f32.mxu0 0.0
      %596 = vmatmul.mubr.f32.gmra.mrb[0].mxu0 %v435
      %v597 = vpop.f32.mrb[0].mxu0
      %v598 = vadd.f32 0.0, %v597
      %v599 = vpop.f32.mrb[0].mxu0
      %600 = vmatprep.mubr.f32.mxu0 0.0
      %601 = vmatmul.mubr.f32.gmra.mrb[0].mxu0 %v436
      %v602 = vpop.f32.mrb[0].mxu0
      %v603 = vadd.f32 0.0, %v602
      %v604 = vpop.f32.mrb[0].mxu0
      %605 = vmatprep.mubr.f32.mxu0 0.0
      %606 = vmatmul.mubr.f32.gmra.mrb[0].mxu0 %v437
      %v607 = vpop.f32.mrb[0].mxu0
      %v608 = vadd.f32 0.0, %v607
      %v609 = vpop.f32.mrb[0].mxu0
      %610 = vmatprep.mubr.f32.mxu0 0.0
      %611 = vmatmul.mubr.f32.gmra.mrb[0].mxu0 %v494
      %v612 = vpop.f32.mrb[0].mxu0
      %v613 = vadd.f32 0.0, %v612
      %v614 = vpop.f32.mrb[0].mxu0
      %615 = vmatprep.mubr.f32.mxu0 0.0
      %616 = vmatmul.mubr.f32.gmra.mrb[0].mxu0 %v495
      %v617 = vpop.f32.mrb[0].mxu0
      %v618 = vadd.f32 0.0, %v617
      %v619 = vpop.f32.mrb[0].mxu0
      %620 = vmatprep.mubr.f32.mxu0 0.0
      %621 = vmatmul.mubr.f32.gmra.mrb[0].mxu0 %v496
      %v622 = vpop.f32.mrb[0].mxu0
      %v623 = vadd.f32 0.0, %v622
      %v624 = vpop.f32.mrb[0].mxu0
      %625 = vmatprep.mubr.f32.mxu0 0.0
      %626 = vmatmul.mubr.f32.gmra.mrb[0].mxu0 %v497
      %v627 = vpop.f32.mrb[0].mxu0
      %v628 = vadd.f32 0.0, %v627
      %v629 = vpop.f32.mrb[0].mxu0
      %630 = vmatprep.mubr.f32.mxu0 0.0
      %631 = vmatmul.mubr.f32.gmra.mrb[0].mxu0 %v498
      %v632 = vpop.f32.mrb[0].mxu0
      %v633 = vadd.f32 0.0, %v632
      %v634 = vpop.f32.mrb[0].mxu0
      %635 = vmatprep.mubr.f32.mxu0 0.0
      %636 = vmatmul.mubr.f32.gmra.mrb[0].mxu0 %v499
      %v637 = vpop.f32.mrb[0].mxu0
      %v638 = vadd.f32 0.0, %v637
      %v639 = vpop.f32.mrb[0].mxu0
      %640 = vmatprep.mubr.f32.mxu0 0.0
      %641 = vmatmul.mubr.f32.gmra.mrb[0].mxu0 %v500
      %v642 = vpop.f32.mrb[0].mxu0
      %v643 = vadd.f32 0.0, %v642
      %v644 = vpop.f32.mrb[0].mxu0
      %645 = vmatprep.mubr.f32.mxu0 0.0
      %646 = vmatmul.mubr.f32.gmra.mrb[0].mxu0 %v501
      %v647 = vpop.f32.mrb[0].mxu0
      %v648 = vadd.f32 0.0, %v647
      %v649 = vpop.f32.mrb[0].mxu0
      %650 = vmatprep.mubr.f32.mxu0 0.0
      %651 = vmatmul.mubr.f32.gmra.mrb[0].mxu0 %v502
      %v652 = vpop.f32.mrb[0].mxu0
      %v653 = vadd.f32 0.0, %v652
      %v654 = vpop.f32.mrb[0].mxu0
      %655 = vmatprep.mubr.f32.mxu0 0.0
      %656 = vmatmul.mubr.f32.gmra.mrb[0].mxu0 %v503
      %v657 = vpop.f32.mrb[0].mxu0
      %v658 = vadd.f32 0.0, %v657
      %v659 = vpop.f32.mrb[0].mxu0
      %660 = vmatprep.mubr.f32.mxu0 0.0
      %661 = vmatmul.mubr.f32.gmra.mrb[0].mxu0 %v504
      %v662 = vpop.f32.mrb[0].mxu0
      %v663 = vadd.f32 0.0, %v662
      %v664 = vpop.f32.mrb[0].mxu0
      %665 = vmatprep.mubr.f32.mxu0 0.0
      %666 = vmatmul.mubr.f32.gmra.mrb[0].mxu0 %v505
      %v667 = vpop.f32.mrb[0].mxu0
      %v668 = vadd.f32 0.0, %v667
      %v669 = vpop.f32.mrb[0].mxu0
      %670 = vdwg.mxu0
      %vm671 = vcmask 261120
      %v673 = vsel %vm671, %v439, 0
      %v676 = vsel %vm671, %v441, 0
      %v679 = vsel %vm671, %v443, 0
      %v682 = vsel %vm671, %v445, 0
      %v685 = vsel %vm671, %v447, 0
      %v688 = vsel %vm671, %v449, 0
      %v691 = vsel %vm671, %v451, 0
      %v694 = vsel %vm671, %v453, 0
      %v697 = vsel %vm671, %v455, 0
      %v700 = vsel %vm671, %v457, 0
      %v703 = vsel %vm671, %v459, 0
      %v706 = vsel %vm671, %v461, 0
      %v709 = vsel %vm671, %v463, 0
      %v712 = vsel %vm671, %v465, 0
      %v715 = vsel %vm671, %v467, 0
      %v718 = vsel %vm671, %v469, 0
      %v721 = vsel %vm671, %v471, 0
      %v724 = vsel %vm671, %v473, 0
      %v727 = vsel %vm671, %v475, 0
      %v730 = vsel %vm671, %v477, 0
      %732 = vmatprep.subr.mxu0 0.0
      %733 = vmatpush1.msra.mxu0 %v573
      %734 = vmatprep.subr.mxu0 0.0
      %735 = vmatpush1.msra.mxu0 %v578
      %736 = vmatprep.subr.mxu0 0.0
      %737 = vmatpush1.msra.mxu0 %v583
      %738 = vmatprep.subr.mxu0 0.0
      %739 = vmatpush1.msra.mxu0 %v588
      %740 = vmatprep.subr.mxu0 0.0
      %741 = vmatpush1.msra.mxu0 %v593
      %742 = vmatprep.subr.mxu0 0.0
      %743 = vmatpush1.msra.mxu0 %v598
      %744 = vmatprep.subr.mxu0 0.0
      %745 = vmatpush1.msra.mxu0 %v603
      %746 = vmatprep.subr.mxu0 0.0
      %747 = vmatpush1.msra.mxu0 %v608
      %748 = vmatprep.subr.mxu0 0.0
      %749 = vmatpush1.msra.mxu0 %v613
      %750 = vmatprep.subr.mxu0 0.0
      %751 = vmatpush1.msra.mxu0 %v618
      %752 = vmatprep.subr.mxu0 0.0
      %753 = vmatpush1.msra.mxu0 %v623
      %754 = vmatprep.subr.mxu0 0.0
      %755 = vmatpush1.msra.mxu0 %v628
      %756 = vmatprep.subr.mxu0 0.0
      %757 = vmatpush1.msra.mxu0 %v633
      %758 = vmatprep.subr.mxu0 0.0
      %759 = vmatpush1.msra.mxu0 %v638
      %760 = vmatprep.subr.mxu0 0.0
      %761 = vmatpush1.msra.mxu0 %v643
      %762 = vmatprep.subr.mxu0 0.0
      %763 = vmatpush1.msra.mxu0 %v648
      %764 = vmatprep.subr.mxu0 0.0
      %765 = vmatpush1.msra.mxu0 %v653
      %766 = vmatprep.subr.mxu0 0.0
      %767 = vmatpush1.msra.mxu0 %v658
      %768 = vmatprep.subr.mxu0 0.0
      %769 = vmatpush1.msra.mxu0 %v663
      %770 = vmatprep.subr.mxu0 0.0
      %771 = vmatpush1.msra.mxu0 %v668
      %772 = vmatprep.subr.mxu0 0.0
      %773 = vmatpush1.msra.mxu0 0.0
      %774 = vmatprep.subr.mxu0 0.0
      %775 = vmatpush1.msra.mxu0 0.0
      %776 = vmatprep.subr.mxu0 0.0
      %777 = vmatpush1.msra.mxu0 0.0
      %778 = vmatprep.subr.mxu0 0.0
      %779 = vmatpush1.msra.mxu0 0.0
      %780 = vmatprep.subr.mxu0 0.0
      %781 = vmatpush1.msra.mxu0 0.0
      %782 = vmatprep.subr.mxu0 0.0
      %783 = vmatpush1.msra.mxu0 0.0
      %784 = vmatprep.subr.mxu0 0.0
      %785 = vmatpush1.msra.mxu0 0.0
      %786 = vmatprep.subr.mxu0 0.0
      %787 = vmatpush1.msra.mxu0 0.0
      %788 = vmatprep.subr.mxu0 0.0
      %789 = vmatpush1.msra.mxu0 0.0
      %790 = vmatprep.subr.mxu0 0.0
      %791 = vmatpush1.msra.mxu0 0.0
      %792 = vmatprep.subr.mxu0 0.0
      %793 = vmatpush1.msra.mxu0 0.0
      %794 = vmatprep.subr.mxu0 0.0
      %795 = vmatpush1.msra.mxu0 0.0
      %796 = vmatprep.mubr.f32.mxu0 %v673
      %797 = vmatmul.mubr.f32.gmra.mrb[0].mxu0 %v438
      %v798 = vpop.f32.mrb[0].mxu0
      %v799 = vadd.f32 0.0, %v798
      %v800 = vpop.f32.mrb[0].mxu0
      %801 = vmatprep.mubr.f32.mxu0 %v676
      %802 = vmatmul.mubr.f32.gmra.mrb[0].mxu0 %v440
      %v803 = vpop.f32.mrb[0].mxu0
      %v804 = vadd.f32 0.0, %v803
      %v805 = vpop.f32.mrb[0].mxu0
      %806 = vmatprep.mubr.f32.mxu0 %v679
      %807 = vmatmul.mubr.f32.gmra.mrb[0].mxu0 %v442
      %v808 = vpop.f32.mrb[0].mxu0
      %v809 = vadd.f32 0.0, %v808
      %v810 = vpop.f32.mrb[0].mxu0
      %811 = vmatprep.mubr.f32.mxu0 %v682
      %812 = vmatmul.mubr.f32.gmra.mrb[0].mxu0 %v444
      %v813 = vpop.f32.mrb[0].mxu0
      %v814 = vadd.f32 0.0, %v813
      %v815 = vpop.f32.mrb[0].mxu0
      %816 = vmatprep.mubr.f32.mxu0 %v685
      %817 = vmatmul.mubr.f32.gmra.mrb[0].mxu0 %v446
      %v818 = vpop.f32.mrb[0].mxu0
      %v819 = vadd.f32 0.0, %v818
      %v820 = vpop.f32.mrb[0].mxu0
      %821 = vmatprep.mubr.f32.mxu0 %v688
      %822 = vmatmul.mubr.f32.gmra.mrb[0].mxu0 %v448
      %v823 = vpop.f32.mrb[0].mxu0
      %v824 = vadd.f32 0.0, %v823
      %v825 = vpop.f32.mrb[0].mxu0
      %826 = vmatprep.mubr.f32.mxu0 %v691
      %827 = vmatmul.mubr.f32.gmra.mrb[0].mxu0 %v450
      %v828 = vpop.f32.mrb[0].mxu0
      %v829 = vadd.f32 0.0, %v828
      %v830 = vpop.f32.mrb[0].mxu0
      %831 = vmatprep.mubr.f32.mxu0 %v694
      %832 = vmatmul.mubr.f32.gmra.mrb[0].mxu0 %v452
      %v833 = vpop.f32.mrb[0].mxu0
      %v834 = vadd.f32 0.0, %v833
      %v835 = vpop.f32.mrb[0].mxu0
      %836 = vmatprep.mubr.f32.mxu0 %v697
      %837 = vmatmul.mubr.f32.gmra.mrb[0].mxu0 %v454
      %v838 = vpop.f32.mrb[0].mxu0
      %v839 = vadd.f32 0.0, %v838
      %v840 = vpop.f32.mrb[0].mxu0
      %841 = vmatprep.mubr.f32.mxu0 %v700
      %842 = vmatmul.mubr.f32.gmra.mrb[0].mxu0 %v456
      %v843 = vpop.f32.mrb[0].mxu0
      %v844 = vadd.f32 0.0, %v843
      %v845 = vpop.f32.mrb[0].mxu0
      %846 = vmatprep.mubr.f32.mxu0 %v703
      %847 = vmatmul.mubr.f32.gmra.mrb[0].mxu0 %v458
      %v848 = vpop.f32.mrb[0].mxu0
      %v849 = vadd.f32 0.0, %v848
      %v850 = vpop.f32.mrb[0].mxu0
      %851 = vmatprep.mubr.f32.mxu0 %v706
      %852 = vmatmul.mubr.f32.gmra.mrb[0].mxu0 %v460
      %v853 = vpop.f32.mrb[0].mxu0
      %v854 = vadd.f32 0.0, %v853
      %v855 = vpop.f32.mrb[0].mxu0
      %856 = vmatprep.mubr.f32.mxu0 %v709
      %857 = vmatmul.mubr.f32.gmra.mrb[0].mxu0 %v462
      %v858 = vpop.f32.mrb[0].mxu0
      %v859 = vadd.f32 0.0, %v858
      %v860 = vpop.f32.mrb[0].mxu0
      %861 = vmatprep.mubr.f32.mxu0 %v712
      %862 = vmatmul.mubr.f32.gmra.mrb[0].mxu0 %v464
      %v863 = vpop.f32.mrb[0].mxu0
      %v864 = vadd.f32 0.0, %v863
      %v865 = vpop.f32.mrb[0].mxu0
      %866 = vmatprep.mubr.f32.mxu0 %v715
      %867 = vmatmul.mubr.f32.gmra.mrb[0].mxu0 %v466
      %v868 = vpop.f32.mrb[0].mxu0
      %v869 = vadd.f32 0.0, %v868
      %v870 = vpop.f32.mrb[0].mxu0
      %871 = vmatprep.mubr.f32.mxu0 %v718
      %872 = vmatmul.mubr.f32.gmra.mrb[0].mxu0 %v468
      %v873 = vpop.f32.mrb[0].mxu0
      %v874 = vadd.f32 0.0, %v873
      %v875 = vpop.f32.mrb[0].mxu0
      %876 = vmatprep.mubr.f32.mxu0 %v721
      %877 = vmatmul.mubr.f32.gmra.mrb[0].mxu0 %v470
      %v878 = vpop.f32.mrb[0].mxu0
      %v879 = vadd.f32 0.0, %v878
      %v880 = vpop.f32.mrb[0].mxu0
      %881 = vmatprep.mubr.f32.mxu0 %v724
      %882 = vmatmul.mubr.f32.gmra.mrb[0].mxu0 %v472
      %v883 = vpop.f32.mrb[0].mxu0
      %v884 = vadd.f32 0.0, %v883
      %v885 = vpop.f32.mrb[0].mxu0
      %886 = vmatprep.mubr.f32.mxu0 %v727
      %887 = vmatmul.mubr.f32.gmra.mrb[0].mxu0 %v474
      %v888 = vpop.f32.mrb[0].mxu0
      %v889 = vadd.f32 0.0, %v888
      %v890 = vpop.f32.mrb[0].mxu0
      %891 = vmatprep.mubr.f32.mxu0 %v730
      %892 = vmatmul.mubr.f32.gmra.mrb[0].mxu0 %v476
      %v893 = vpop.f32.mrb[0].mxu0
      %v894 = vadd.f32 0.0, %v893
      %v895 = vpop.f32.mrb[0].mxu0
      %896 = vdwg.mxu0
      %v897 = vmul.f32 %v799, %v799
      %v898 = vmul.f32 %v804, %v804
      %v899 = vmul.f32 %v809, %v809
      %v900 = vmul.f32 %v814, %v814
      %v901 = vmul.f32 %v819, %v819
      %v902 = vmul.f32 %v824, %v824
      %v903 = vmul.f32 %v829, %v829
      %v904 = vmul.f32 %v834, %v834
      %v905 = vmul.f32 %v799, %v819
      %v906 = vmul.f32 %v804, %v824
      %v907 = vmul.f32 %v809, %v829
      %v908 = vmul.f32 %v814, %v834
      %v909 = vsub.f32 %v839, %v897
      %v910 = vsub.f32 %v844, %v898
      %v911 = vsub.f32 %v849, %v899
      %v912 = vsub.f32 %v854, %v900
      %v913 = vsub.f32 %v859, %v901
      %v914 = vsub.f32 %v864, %v902
      %v915 = vsub.f32 %v869, %v903
      %v916 = vsub.f32 %v874, %v904
      %v917 = vsub.f32 %v879, %v905
      %v918 = vsub.f32 %v884, %v906
      %v919 = vsub.f32 %v889, %v907
      %v920 = vsub.f32 %v894, %v908
      %v921 = vmul.f32 %v917, 2.0
      %v922 = vmul.f32 %v918, 2.0
      %v923 = vmul.f32 %v919, 2.0
      %v924 = vmul.f32 %v920, 2.0
      %v925 = vadd.f32 %v921, 58.5225
      %v926 = vadd.f32 %v922, 58.5225
      %v927 = vadd.f32 %v923, 58.5225
      %v928 = vadd.f32 %v924, 58.5225
      %v929 = vadd.f32 %v909, %v913
      %v930 = vadd.f32 %v910, %v914
      %v931 = vadd.f32 %v911, %v915
      %v932 = vadd.f32 %v912, %v916
      %v933 = vadd.f32 %v929, 58.5225
      %v934 = vadd.f32 %v930, 58.5225
      %v935 = vadd.f32 %v931, 58.5225
      %v936 = vadd.f32 %v932, 58.5225
      %v937 = vrcp.pop %v933
      %v938 = vmul.f32 1.0, %v937
      %v939 = vrcp.pop %v934
      %v940 = vmul.f32 1.0, %v939
      %v941 = vrcp.pop %v935
      %v942 = vmul.f32 1.0, %v941
      %v943 = vrcp.pop %v936
      %v944 = vmul.f32 1.0, %v943
      %v945 = vmul.f32 %v925, %v938
      %v946 = vmul.f32 %v926, %v940
      %v947 = vmul.f32 %v927, %v942
      %v948 = vmul.f32 %v928, %v944
      %v949 = vmul.f32 %v905, 2.0
      %v950 = vmul.f32 %v906, 2.0
      %v951 = vmul.f32 %v907, 2.0
      %v952 = vmul.f32 %v908, 2.0
      %v953 = vadd.f32 %v949, 6.5025
      %v954 = vadd.f32 %v950, 6.5025
      %v955 = vadd.f32 %v951, 6.5025
      %v956 = vadd.f32 %v952, 6.5025
      %v957 = vadd.f32 %v897, %v901
      %v958 = vadd.f32 %v898, %v902
      %v959 = vadd.f32 %v899, %v903
      %v960 = vadd.f32 %v900, %v904
      %v961 = vadd.f32 %v957, 6.5025
      %v962 = vadd.f32 %v958, 6.5025
      %v963 = vadd.f32 %v959, 6.5025
      %v964 = vadd.f32 %v960, 6.5025
      %v965 = vrcp.pop %v961
      %v966 = vmul.f32 %v953, %v965
      %v967 = vrcp.pop %v962
      %v968 = vmul.f32 %v954, %v967
      %v969 = vrcp.pop %v963
      %v970 = vmul.f32 %v955, %v969
      %v971 = vrcp.pop %v964
      %v972 = vmul.f32 %v956, %v971
      %v973 = vmul.f32 %v945, %v966
      %v974 = vmul.f32 %v946, %v968
      %v975 = vmul.f32 %v947, %v970
      %v976 = vmul.f32 %v948, %v972
      %v977 = vadd.f32 %v973, %v974
      %v978 = vadd.f32 %v977, %v975
      %v979 = vadd.f32 %v978, %v976
      %980 = vadd.xlane.f32.xlu0 %v979
      %v981 = vpop.xlane.xlu0 %980
      %v982 = vrot.slane %v981, 4
      %v983 = vadd.f32 %v981, %v982
      %v984 = vrot.slane %v983, 2
      %v985 = vadd.f32 %v983, %v984
      %v986 = vrot.slane %v985, 1
      %v987 = vadd.f32 %v985, %v986
      %s988 = vtos %v987
      %v989 = vadd.f32 %v945, %v946
      %v990 = vadd.f32 %v989, %v947
      %v991 = vadd.f32 %v990, %v948
      %992 = vadd.xlane.f32.xlu0 %v991
      %v993 = vpop.xlane.xlu0 %992
      %v994 = vrot.slane %v993, 4
      %v995 = vadd.f32 %v993, %v994
      %v996 = vrot.slane %v995, 2
      %v997 = vadd.f32 %v995, %v996
      %v998 = vrot.slane %v997, 1
      %v999 = vadd.f32 %v997, %v998
      %s1000 = vtos %v999
      %v1001 = vld [vmem:[%s8] sm:$0xff]
      %v1002 = vld [vmem:[%s8 + $0x8] sm:$0xff]
      %v1003 = vld [vmem:[%s8 + $0x10] sm:$0xff]
      %v1004 = vld [vmem:[%s8 + $0x18] sm:$0xff]
      %v1005 = vld [vmem:[%s9] sm:$0xff]
      %v1006 = vld [vmem:[%s9 + $0x8] sm:$0xff]
      %v1007 = vld [vmem:[%s9 + $0x10] sm:$0xff]
      %v1008 = vld [vmem:[%s9 + $0x18] sm:$0xff]
      %v1009 = vld [vmem:[%s9 + $0x20] sm:$0xff]
      %v1010 = vld [vmem:[%s9 + $0x28] sm:$0xff]
      %v1011 = vld [vmem:[%s9 + $0x30] sm:$0xff]
      %v1012 = vld [vmem:[%s9 + $0x38] sm:$0xff]
      %v1013 = vld [vmem:[%s9 + $0x40] sm:$0xff]
      %v1014 = vld [vmem:[%s9 + $0x48] sm:$0xff]
      %v1015 = vld [vmem:[%s9 + $0x50] sm:$0xff]
      %v1016 = vld [vmem:[%s9 + $0x58] sm:$0xff]
      %v1017 = vld [vmem:[%s9 + $0x60] sm:$0xff]
      %v1018 = vld [vmem:[%s9 + $0x68] sm:$0xff]
      %v1019 = vld [vmem:[%s9 + $0x70] sm:$0xff]
      %v1020 = vld [vmem:[%s9 + $0x78] sm:$0xff]
      %vm1021 = vcmask 523264
      %v1023 = vsel %vm1021, %v1001, 0
      %v1026 = vsel %vm1021, %v1002, 0
      %v1029 = vsel %vm1021, %v1003, 0
      %v1032 = vsel %vm1021, %v1004, 0
      %1034 = vmatprep.subr.mxu0 0.0
      %1035 = vmatpush1.msra.mxu0 %v430
      %1036 = vmatprep.subr.mxu0 0.0
      %1037 = vmatpush1.msra.mxu0 %v431
      %1038 = vmatprep.subr.mxu0 0.0
      %1039 = vmatpush1.msra.mxu0 %v432
      %1040 = vmatprep.subr.mxu0 0.0
      %1041 = vmatpush1.msra.mxu0 %v433
      %1042 = vmatprep.subr.mxu0 0.0
      %1043 = vmatpush1.msra.mxu0 %v434
      %1044 = vmatprep.subr.mxu0 0.0
      %1045 = vmatpush1.msra.mxu0 %v435
      %1046 = vmatprep.subr.mxu0 0.0
      %1047 = vmatpush1.msra.mxu0 %v436
      %1048 = vmatprep.subr.mxu0 0.0
      %1049 = vmatpush1.msra.mxu0 %v437
      %1050 = vmatprep.subr.mxu0 0.0
      %1051 = vmatpush1.msra.mxu0 0.0
      %1052 = vmatprep.subr.mxu0 0.0
      %1053 = vmatpush1.msra.mxu0 0.0
      %1054 = vmatprep.subr.mxu0 0.0
      %1055 = vmatpush1.msra.mxu0 0.0
      %1056 = vmatprep.subr.mxu0 0.0
      %1057 = vmatpush1.msra.mxu0 0.0
      %1058 = vmatprep.subr.mxu0 0.0
      %1059 = vmatpush1.msra.mxu0 0.0
      %1060 = vmatprep.subr.mxu0 0.0
      %1061 = vmatpush1.msra.mxu0 0.0
      %1062 = vmatprep.subr.mxu0 0.0
      %1063 = vmatpush1.msra.mxu0 0.0
      %1064 = vmatprep.subr.mxu0 0.0
      %1065 = vmatpush1.msra.mxu0 0.0
      %1066 = vmatprep.subr.mxu0 0.0
      %1067 = vmatpush1.msra.mxu0 0.0
      %1068 = vmatprep.subr.mxu0 0.0
      %1069 = vmatpush1.msra.mxu0 0.0
      %1070 = vmatprep.subr.mxu0 0.0
      %1071 = vmatpush1.msra.mxu0 0.0
      %1072 = vmatprep.subr.mxu0 0.0
      %1073 = vmatpush1.msra.mxu0 0.0
      %1074 = vmatprep.subr.mxu0 0.0
      %1075 = vmatpush1.msra.mxu0 0.0
      %1076 = vmatprep.subr.mxu0 0.0
      %1077 = vmatpush1.msra.mxu0 0.0
      %1078 = vmatprep.subr.mxu0 0.0
      %1079 = vmatpush1.msra.mxu0 0.0
      %1080 = vmatprep.subr.mxu0 0.0
      %1081 = vmatpush1.msra.mxu0 0.0
      %1082 = vmatprep.subr.mxu0 0.0
      %1083 = vmatpush1.msra.mxu0 0.0
      %1084 = vmatprep.subr.mxu0 0.0
      %1085 = vmatpush1.msra.mxu0 0.0
      %1086 = vmatprep.subr.mxu0 0.0
      %1087 = vmatpush1.msra.mxu0 0.0
      %1088 = vmatprep.subr.mxu0 0.0
      %1089 = vmatpush1.msra.mxu0 0.0
      %1090 = vmatprep.subr.mxu0 0.0
      %1091 = vmatpush1.msra.mxu0 0.0
      %1092 = vmatprep.subr.mxu0 0.0
      %1093 = vmatpush1.msra.mxu0 0.0
      %1094 = vmatprep.subr.mxu0 0.0
      %1095 = vmatpush1.msra.mxu0 0.0
      %1096 = vmatprep.subr.mxu0 0.0
      %1097 = vmatpush1.msra.mxu0 0.0
      %1098 = vmatprep.mubr.f32.mxu0 0.0
      %1099 = vmatmul.mubr.f32.gmra.mrb[0].mxu0 %v1023
      %v1100 = vpop.f32.mrb[0].mxu0
      %v1101 = vadd.f32 0.0, %v1100
      %v1102 = vpop.f32.mrb[0].mxu0
      %1103 = vmatprep.mubr.f32.mxu0 0.0
      %1104 = vmatmul.mubr.f32.gmra.mrb[0].mxu0 %v1026
      %v1105 = vpop.f32.mrb[0].mxu0
      %v1106 = vadd.f32 0.0, %v1105
      %v1107 = vpop.f32.mrb[0].mxu0
      %1108 = vmatprep.mubr.f32.mxu0 0.0
      %1109 = vmatmul.mubr.f32.gmra.mrb[0].mxu0 %v1029
      %v1110 = vpop.f32.mrb[0].mxu0
      %v1111 = vadd.f32 0.0, %v1110
      %v1112 = vpop.f32.mrb[0].mxu0
      %1113 = vmatprep.mubr.f32.mxu0 0.0
      %1114 = vmatmul.mubr.f32.gmra.mrb[0].mxu0 %v1032
      %v1115 = vpop.f32.mrb[0].mxu0
      %v1116 = vadd.f32 0.0, %v1115
      %v1117 = vpop.f32.mrb[0].mxu0
      %1118 = vdwg.mxu0
      %1119 = vmatprep.subr.mxu0 0.0
      %1120 = vmatpush1.msra.mxu0 %v1005
      %1121 = vmatprep.subr.mxu0 0.0
      %1122 = vmatpush1.msra.mxu0 %v1006
      %1123 = vmatprep.subr.mxu0 0.0
      %1124 = vmatpush1.msra.mxu0 %v1007
      %1125 = vmatprep.subr.mxu0 0.0
      %1126 = vmatpush1.msra.mxu0 %v1008
      %1127 = vmatprep.subr.mxu0 0.0
      %1128 = vmatpush1.msra.mxu0 %v1009
      %1129 = vmatprep.subr.mxu0 0.0
      %1130 = vmatpush1.msra.mxu0 %v1010
      %1131 = vmatprep.subr.mxu0 0.0
      %1132 = vmatpush1.msra.mxu0 %v1011
      %1133 = vmatprep.subr.mxu0 0.0
      %1134 = vmatpush1.msra.mxu0 %v1012
      %1135 = vmatprep.subr.mxu0 0.0
      %1136 = vmatpush1.msra.mxu0 %v1013
      %1137 = vmatprep.subr.mxu0 0.0
      %1138 = vmatpush1.msra.mxu0 %v1014
      %1139 = vmatprep.subr.mxu0 0.0
      %1140 = vmatpush1.msra.mxu0 %v1015
      %1141 = vmatprep.subr.mxu0 0.0
      %1142 = vmatpush1.msra.mxu0 %v1016
      %1143 = vmatprep.subr.mxu0 0.0
      %1144 = vmatpush1.msra.mxu0 %v1017
      %1145 = vmatprep.subr.mxu0 0.0
      %1146 = vmatpush1.msra.mxu0 %v1018
      %1147 = vmatprep.subr.mxu0 0.0
      %1148 = vmatpush1.msra.mxu0 %v1019
      %1149 = vmatprep.subr.mxu0 0.0
      %1150 = vmatpush1.msra.mxu0 %v1020
      %1151 = vmatprep.subr.mxu0 0.0
      %1152 = vmatpush1.msra.mxu0 0.0
      %1153 = vmatprep.subr.mxu0 0.0
      %1154 = vmatpush1.msra.mxu0 0.0
      %1155 = vmatprep.subr.mxu0 0.0
      %1156 = vmatpush1.msra.mxu0 0.0
      %1157 = vmatprep.subr.mxu0 0.0
      %1158 = vmatpush1.msra.mxu0 0.0
      %1159 = vmatprep.subr.mxu0 0.0
      %1160 = vmatpush1.msra.mxu0 0.0
      %1161 = vmatprep.subr.mxu0 0.0
      %1162 = vmatpush1.msra.mxu0 0.0
      %1163 = vmatprep.subr.mxu0 0.0
      %1164 = vmatpush1.msra.mxu0 0.0
      %1165 = vmatprep.subr.mxu0 0.0
      %1166 = vmatpush1.msra.mxu0 0.0
      %1167 = vmatprep.subr.mxu0 0.0
      %1168 = vmatpush1.msra.mxu0 0.0
      %1169 = vmatprep.subr.mxu0 0.0
      %1170 = vmatpush1.msra.mxu0 0.0
      %1171 = vmatprep.subr.mxu0 0.0
      %1172 = vmatpush1.msra.mxu0 0.0
      %1173 = vmatprep.subr.mxu0 0.0
      %1174 = vmatpush1.msra.mxu0 0.0
      %1175 = vmatprep.subr.mxu0 0.0
      %1176 = vmatpush1.msra.mxu0 0.0
      %1177 = vmatprep.subr.mxu0 0.0
      %1178 = vmatpush1.msra.mxu0 0.0
      %1179 = vmatprep.subr.mxu0 0.0
      %1180 = vmatpush1.msra.mxu0 0.0
      %1181 = vmatprep.subr.mxu0 0.0
      %1182 = vmatpush1.msra.mxu0 0.0
      %1183 = vmatprep.mubr.f32.mxu0 0.0
      %1184 = vmatmul.mubr.f32.gmra.mrb[0].mxu0 %v1101
      %v1185 = vpop.f32.mrb[0].mxu0
      %v1186 = vadd.f32 0.0, %v1185
      %v1187 = vpop.f32.mrb[0].mxu0
      %1188 = vmatprep.mubr.f32.mxu0 0.0
      %1189 = vmatmul.mubr.f32.gmra.mrb[0].mxu0 %v1106
      %v1190 = vpop.f32.mrb[0].mxu0
      %v1191 = vadd.f32 0.0, %v1190
      %v1192 = vpop.f32.mrb[0].mxu0
      %1193 = vmatprep.mubr.f32.mxu0 0.0
      %1194 = vmatmul.mubr.f32.gmra.mrb[0].mxu0 %v1111
      %v1195 = vpop.f32.mrb[0].mxu0
      %v1196 = vadd.f32 0.0, %v1195
      %v1197 = vpop.f32.mrb[0].mxu0
      %1198 = vmatprep.mubr.f32.mxu0 0.0
      %1199 = vmatmul.mubr.f32.gmra.mrb[0].mxu0 %v1116
      %v1200 = vpop.f32.mrb[0].mxu0
      %v1201 = vadd.f32 0.0, %v1200
      %v1202 = vpop.f32.mrb[0].mxu0
      %1203 = vdwg.mxu0
      %v1204 = vld [vmem:[%s4] sm:$0xff]
      %v1205 = vld [vmem:[%s4 + $0x8] sm:$0xff]
      %v1206 = vld [vmem:[%s4 + $0x10] sm:$0xff]
      %v1207 = vld [vmem:[%s4 + $0x18] sm:$0xff]
      %v1208 = vld [vmem:[%s4 + $0x20] sm:$0xff]
      %v1209 = vld [vmem:[%s4 + $0x28] sm:$0xff]
      %v1210 = vld [vmem:[%s4 + $0x30] sm:$0xff]
      %v1211 = vld [vmem:[%s4 + $0x38] sm:$0xff]
      %v1212 = vld [vmem:[%s4 + $0x40] sm:$0xff]
      %v1213 = vld [vmem:[%s4 + $0x48] sm:$0xff]
      %v1214 = vld [vmem:[%s5] sm:$0xff]
      %v1215 = vld [vmem:[%s5 + $0x8] sm:$0xff]
      %v1216 = vld [vmem:[%s5 + $0x10] sm:$0xff]
      %v1217 = vld [vmem:[%s5 + $0x18] sm:$0xff]
      %v1218 = vld [vmem:[%s5 + $0x20] sm:$0xff]
      %v1219 = vld [vmem:[%s5 + $0x28] sm:$0xff]
      %v1220 = vld [vmem:[%s5 + $0x30] sm:$0xff]
      %v1221 = vld [vmem:[%s5 + $0x38] sm:$0xff]
      %v1222 = vmul.f32 %v1186, %v1186
      %v1223 = vmul.f32 %v1191, %v1191
      %v1224 = vmul.f32 %v1196, %v1196
      %v1225 = vmul.f32 %v1201, %v1201
      %v1226 = vmul.f32 %v1186, %v1196
      %v1227 = vmul.f32 %v1191, %v1201
      %v1229 = vsel %vm1021, %v1186, 0
      %v1232 = vsel %vm1021, %v1191, 0
      %v1235 = vsel %vm1021, %v1196, 0
      %v1238 = vsel %vm1021, %v1201, 0
      %v1241 = vsel %vm1021, %v1222, 0
      %v1244 = vsel %vm1021, %v1223, 0
      %v1247 = vsel %vm1021, %v1224, 0
      %v1250 = vsel %vm1021, %v1225, 0
      %v1253 = vsel %vm1021, %v1226, 0
      %v1256 = vsel %vm1021, %v1227, 0
      %1258 = vmatprep.subr.mxu0 0.0
      %1259 = vmatpush1.msra.mxu0 %v1214
      %1260 = vmatprep.subr.mxu0 0.0
      %1261 = vmatpush1.msra.mxu0 %v1215
      %1262 = vmatprep.subr.mxu0 0.0
      %1263 = vmatpush1.msra.mxu0 %v1216
      %1264 = vmatprep.subr.mxu0 0.0
      %1265 = vmatpush1.msra.mxu0 %v1217
      %1266 = vmatprep.subr.mxu0 0.0
      %1267 = vmatpush1.msra.mxu0 %v1218
      %1268 = vmatprep.subr.mxu0 0.0
      %1269 = vmatpush1.msra.mxu0 %v1219
      %1270 = vmatprep.subr.mxu0 0.0
      %1271 = vmatpush1.msra.mxu0 %v1220
      %1272 = vmatprep.subr.mxu0 0.0
      %1273 = vmatpush1.msra.mxu0 %v1221
      %1274 = vmatprep.subr.mxu0 0.0
      %1275 = vmatpush1.msra.mxu0 0.0
      %1276 = vmatprep.subr.mxu0 0.0
      %1277 = vmatpush1.msra.mxu0 0.0
      %1278 = vmatprep.subr.mxu0 0.0
      %1279 = vmatpush1.msra.mxu0 0.0
      %1280 = vmatprep.subr.mxu0 0.0
      %1281 = vmatpush1.msra.mxu0 0.0
      %1282 = vmatprep.subr.mxu0 0.0
      %1283 = vmatpush1.msra.mxu0 0.0
      %1284 = vmatprep.subr.mxu0 0.0
      %1285 = vmatpush1.msra.mxu0 0.0
      %1286 = vmatprep.subr.mxu0 0.0
      %1287 = vmatpush1.msra.mxu0 0.0
      %1288 = vmatprep.subr.mxu0 0.0
      %1289 = vmatpush1.msra.mxu0 0.0
      %1290 = vmatprep.subr.mxu0 0.0
      %1291 = vmatpush1.msra.mxu0 0.0
      %1292 = vmatprep.subr.mxu0 0.0
      %1293 = vmatpush1.msra.mxu0 0.0
      %1294 = vmatprep.subr.mxu0 0.0
      %1295 = vmatpush1.msra.mxu0 0.0
      %1296 = vmatprep.subr.mxu0 0.0
      %1297 = vmatpush1.msra.mxu0 0.0
      %1298 = vmatprep.subr.mxu0 0.0
      %1299 = vmatpush1.msra.mxu0 0.0
      %1300 = vmatprep.subr.mxu0 0.0
      %1301 = vmatpush1.msra.mxu0 0.0
      %1302 = vmatprep.subr.mxu0 0.0
      %1303 = vmatpush1.msra.mxu0 0.0
      %1304 = vmatprep.subr.mxu0 0.0
      %1305 = vmatpush1.msra.mxu0 0.0
      %1306 = vmatprep.subr.mxu0 0.0
      %1307 = vmatpush1.msra.mxu0 0.0
      %1308 = vmatprep.subr.mxu0 0.0
      %1309 = vmatpush1.msra.mxu0 0.0
      %1310 = vmatprep.subr.mxu0 0.0
      %1311 = vmatpush1.msra.mxu0 0.0
      %1312 = vmatprep.subr.mxu0 0.0
      %1313 = vmatpush1.msra.mxu0 0.0
      %1314 = vmatprep.subr.mxu0 0.0
      %1315 = vmatpush1.msra.mxu0 0.0
      %1316 = vmatprep.subr.mxu0 0.0
      %1317 = vmatpush1.msra.mxu0 0.0
      %1318 = vmatprep.subr.mxu0 0.0
      %1319 = vmatpush1.msra.mxu0 0.0
      %1320 = vmatprep.subr.mxu0 0.0
      %1321 = vmatpush1.msra.mxu0 0.0
      %1322 = vmatprep.mubr.f32.mxu0 0.0
      %1323 = vmatmul.mubr.f32.gmra.mrb[0].mxu0 %v1229
      %v1324 = vpop.f32.mrb[0].mxu0
      %v1325 = vadd.f32 0.0, %v1324
      %v1326 = vpop.f32.mrb[0].mxu0
      %1327 = vmatprep.mubr.f32.mxu0 0.0
      %1328 = vmatmul.mubr.f32.gmra.mrb[0].mxu0 %v1232
      %v1329 = vpop.f32.mrb[0].mxu0
      %v1330 = vadd.f32 0.0, %v1329
      %v1331 = vpop.f32.mrb[0].mxu0
      %1332 = vmatprep.mubr.f32.mxu0 0.0
      %1333 = vmatmul.mubr.f32.gmra.mrb[0].mxu0 %v1235
      %v1334 = vpop.f32.mrb[0].mxu0
      %v1335 = vadd.f32 0.0, %v1334
      %v1336 = vpop.f32.mrb[0].mxu0
      %1337 = vmatprep.mubr.f32.mxu0 0.0
      %1338 = vmatmul.mubr.f32.gmra.mrb[0].mxu0 %v1238
      %v1339 = vpop.f32.mrb[0].mxu0
      %v1340 = vadd.f32 0.0, %v1339
      %v1341 = vpop.f32.mrb[0].mxu0
      %1342 = vmatprep.mubr.f32.mxu0 0.0
      %1343 = vmatmul.mubr.f32.gmra.mrb[0].mxu0 %v1241
      %v1344 = vpop.f32.mrb[0].mxu0
      %v1345 = vadd.f32 0.0, %v1344
      %v1346 = vpop.f32.mrb[0].mxu0
      %1347 = vmatprep.mubr.f32.mxu0 0.0
      %1348 = vmatmul.mubr.f32.gmra.mrb[0].mxu0 %v1244
      %v1349 = vpop.f32.mrb[0].mxu0
      %v1350 = vadd.f32 0.0, %v1349
      %v1351 = vpop.f32.mrb[0].mxu0
      %1352 = vmatprep.mubr.f32.mxu0 0.0
      %1353 = vmatmul.mubr.f32.gmra.mrb[0].mxu0 %v1247
      %v1354 = vpop.f32.mrb[0].mxu0
      %v1355 = vadd.f32 0.0, %v1354
      %v1356 = vpop.f32.mrb[0].mxu0
      %1357 = vmatprep.mubr.f32.mxu0 0.0
      %1358 = vmatmul.mubr.f32.gmra.mrb[0].mxu0 %v1250
      %v1359 = vpop.f32.mrb[0].mxu0
      %v1360 = vadd.f32 0.0, %v1359
      %v1361 = vpop.f32.mrb[0].mxu0
      %1362 = vmatprep.mubr.f32.mxu0 0.0
      %1363 = vmatmul.mubr.f32.gmra.mrb[0].mxu0 %v1253
      %v1364 = vpop.f32.mrb[0].mxu0
      %v1365 = vadd.f32 0.0, %v1364
      %v1366 = vpop.f32.mrb[0].mxu0
      %1367 = vmatprep.mubr.f32.mxu0 0.0
      %1368 = vmatmul.mubr.f32.gmra.mrb[0].mxu0 %v1256
      %v1369 = vpop.f32.mrb[0].mxu0
      %v1370 = vadd.f32 0.0, %v1369
      %v1371 = vpop.f32.mrb[0].mxu0
      %1372 = vdwg.mxu0
      %vm1373 = vcmask 654336
      %v1375 = vsel %vm1373, %v1204, 0
      %v1378 = vsel %vm1373, %v1205, 0
      %v1381 = vsel %vm1373, %v1206, 0
      %v1384 = vsel %vm1373, %v1207, 0
      %v1387 = vsel %vm1373, %v1208, 0
      %v1390 = vsel %vm1373, %v1209, 0
      %v1393 = vsel %vm1373, %v1210, 0
      %v1396 = vsel %vm1373, %v1211, 0
      %v1399 = vsel %vm1373, %v1212, 0
      %v1402 = vsel %vm1373, %v1213, 0
      %1404 = vmatprep.subr.mxu0 0.0
      %1405 = vmatpush1.msra.mxu0 %v1325
      %1406 = vmatprep.subr.mxu0 0.0
      %1407 = vmatpush1.msra.mxu0 %v1330
      %1408 = vmatprep.subr.mxu0 0.0
      %1409 = vmatpush1.msra.mxu0 %v1335
      %1410 = vmatprep.subr.mxu0 0.0
      %1411 = vmatpush1.msra.mxu0 %v1340
      %1412 = vmatprep.subr.mxu0 0.0
      %1413 = vmatpush1.msra.mxu0 %v1345
      %1414 = vmatprep.subr.mxu0 0.0
      %1415 = vmatpush1.msra.mxu0 %v1350
      %1416 = vmatprep.subr.mxu0 0.0
      %1417 = vmatpush1.msra.mxu0 %v1355
      %1418 = vmatprep.subr.mxu0 0.0
      %1419 = vmatpush1.msra.mxu0 %v1360
      %1420 = vmatprep.subr.mxu0 0.0
      %1421 = vmatpush1.msra.mxu0 %v1365
      %1422 = vmatprep.subr.mxu0 0.0
      %1423 = vmatpush1.msra.mxu0 %v1370
      %1424 = vmatprep.subr.mxu0 0.0
      %1425 = vmatpush1.msra.mxu0 0.0
      %1426 = vmatprep.subr.mxu0 0.0
      %1427 = vmatpush1.msra.mxu0 0.0
      %1428 = vmatprep.subr.mxu0 0.0
      %1429 = vmatpush1.msra.mxu0 0.0
      %1430 = vmatprep.subr.mxu0 0.0
      %1431 = vmatpush1.msra.mxu0 0.0
      %1432 = vmatprep.subr.mxu0 0.0
      %1433 = vmatpush1.msra.mxu0 0.0
      %1434 = vmatprep.subr.mxu0 0.0
      %1435 = vmatpush1.msra.mxu0 0.0
      %1436 = vmatprep.subr.mxu0 0.0
      %1437 = vmatpush1.msra.mxu0 0.0
      %1438 = vmatprep.subr.mxu0 0.0
      %1439 = vmatpush1.msra.mxu0 0.0
      %1440 = vmatprep.subr.mxu0 0.0
      %1441 = vmatpush1.msra.mxu0 0.0
      %1442 = vmatprep.subr.mxu0 0.0
      %1443 = vmatpush1.msra.mxu0 0.0
      %1444 = vmatprep.subr.mxu0 0.0
      %1445 = vmatpush1.msra.mxu0 0.0
      %1446 = vmatprep.subr.mxu0 0.0
      %1447 = vmatpush1.msra.mxu0 0.0
      %1448 = vmatprep.subr.mxu0 0.0
      %1449 = vmatpush1.msra.mxu0 0.0
      %1450 = vmatprep.subr.mxu0 0.0
      %1451 = vmatpush1.msra.mxu0 0.0
      %1452 = vmatprep.subr.mxu0 0.0
      %1453 = vmatpush1.msra.mxu0 0.0
      %1454 = vmatprep.subr.mxu0 0.0
      %1455 = vmatpush1.msra.mxu0 0.0
      %1456 = vmatprep.subr.mxu0 0.0
      %1457 = vmatpush1.msra.mxu0 0.0
      %1458 = vmatprep.subr.mxu0 0.0
      %1459 = vmatpush1.msra.mxu0 0.0
      %1460 = vmatprep.subr.mxu0 0.0
      %1461 = vmatpush1.msra.mxu0 0.0
      %1462 = vmatprep.subr.mxu0 0.0
      %1463 = vmatpush1.msra.mxu0 0.0
      %1464 = vmatprep.subr.mxu0 0.0
      %1465 = vmatpush1.msra.mxu0 0.0
      %1466 = vmatprep.subr.mxu0 0.0
      %1467 = vmatpush1.msra.mxu0 0.0
      %1468 = vmatprep.mubr.f32.mxu0 0.0
      %1469 = vmatmul.mubr.f32.gmra.mrb[0].mxu0 %v1375
      %v1470 = vpop.f32.mrb[0].mxu0
      %v1471 = vadd.f32 0.0, %v1470
      %v1472 = vpop.f32.mrb[0].mxu0
      %1473 = vmatprep.mubr.f32.mxu0 0.0
      %1474 = vmatmul.mubr.f32.gmra.mrb[0].mxu0 %v1378
      %v1475 = vpop.f32.mrb[0].mxu0
      %v1476 = vadd.f32 0.0, %v1475
      %v1477 = vpop.f32.mrb[0].mxu0
      %1478 = vmatprep.mubr.f32.mxu0 0.0
      %1479 = vmatmul.mubr.f32.gmra.mrb[0].mxu0 %v1381
      %v1480 = vpop.f32.mrb[0].mxu0
      %v1481 = vadd.f32 0.0, %v1480
      %v1482 = vpop.f32.mrb[0].mxu0
      %1483 = vmatprep.mubr.f32.mxu0 0.0
      %1484 = vmatmul.mubr.f32.gmra.mrb[0].mxu0 %v1384
      %v1485 = vpop.f32.mrb[0].mxu0
      %v1486 = vadd.f32 0.0, %v1485
      %v1487 = vpop.f32.mrb[0].mxu0
      %1488 = vmatprep.mubr.f32.mxu0 0.0
      %1489 = vmatmul.mubr.f32.gmra.mrb[0].mxu0 %v1387
      %v1490 = vpop.f32.mrb[0].mxu0
      %v1491 = vadd.f32 0.0, %v1490
      %v1492 = vpop.f32.mrb[0].mxu0
      %1493 = vmatprep.mubr.f32.mxu0 0.0
      %1494 = vmatmul.mubr.f32.gmra.mrb[0].mxu0 %v1390
      %v1495 = vpop.f32.mrb[0].mxu0
      %v1496 = vadd.f32 0.0, %v1495
      %v1497 = vpop.f32.mrb[0].mxu0
      %1498 = vmatprep.mubr.f32.mxu0 0.0
      %1499 = vmatmul.mubr.f32.gmra.mrb[0].mxu0 %v1393
      %v1500 = vpop.f32.mrb[0].mxu0
      %v1501 = vadd.f32 0.0, %v1500
      %v1502 = vpop.f32.mrb[0].mxu0
      %1503 = vmatprep.mubr.f32.mxu0 0.0
      %1504 = vmatmul.mubr.f32.gmra.mrb[0].mxu0 %v1396
      %v1505 = vpop.f32.mrb[0].mxu0
      %v1506 = vadd.f32 0.0, %v1505
      %v1507 = vpop.f32.mrb[0].mxu0
      %1508 = vmatprep.mubr.f32.mxu0 0.0
      %1509 = vmatmul.mubr.f32.gmra.mrb[0].mxu0 %v1399
      %v1510 = vpop.f32.mrb[0].mxu0
      %v1511 = vadd.f32 0.0, %v1510
      %v1512 = vpop.f32.mrb[0].mxu0
      %1513 = vmatprep.mubr.f32.mxu0 0.0
      %1514 = vmatmul.mubr.f32.gmra.mrb[0].mxu0 %v1402
      %v1515 = vpop.f32.mrb[0].mxu0
      %v1516 = vadd.f32 0.0, %v1515
      %v1517 = vpop.f32.mrb[0].mxu0
      %1518 = vdwg.mxu0
      %v1519 = vmul.f32 %v1471, %v1471
      %v1520 = vmul.f32 %v1476, %v1476
      %v1521 = vmul.f32 %v1481, %v1481
      %v1522 = vmul.f32 %v1486, %v1486
      %v1523 = vmul.f32 %v1471, %v1481
      %v1524 = vmul.f32 %v1476, %v1486
      %v1525 = vsub.f32 %v1491, %v1519
      %v1526 = vsub.f32 %v1496, %v1520
      %v1527 = vsub.f32 %v1501, %v1521
      %v1528 = vsub.f32 %v1506, %v1522
      %v1529 = vsub.f32 %v1511, %v1523
      %v1530 = vsub.f32 %v1516, %v1524
      %v1531 = vmul.f32 %v1529, 2.0
      %v1532 = vmul.f32 %v1530, 2.0
      %v1533 = vadd.f32 %v1531, 58.5225
      %v1534 = vadd.f32 %v1532, 58.5225
      %v1535 = vadd.f32 %v1525, %v1527
      %v1536 = vadd.f32 %v1526, %v1528
      %v1537 = vadd.f32 %v1535, 58.5225
      %v1538 = vadd.f32 %v1536, 58.5225
      %v1539 = vrcp.pop %v1537
      %v1540 = vmul.f32 1.0, %v1539
      %v1541 = vrcp.pop %v1538
      %v1542 = vmul.f32 1.0, %v1541
      %v1543 = vmul.f32 %v1533, %v1540
      %v1544 = vmul.f32 %v1534, %v1542
      %v1545 = vmul.f32 %v1523, 2.0
      %v1546 = vmul.f32 %v1524, 2.0
      %v1547 = vadd.f32 %v1545, 6.5025
      %v1548 = vadd.f32 %v1546, 6.5025
      %v1549 = vadd.f32 %v1519, %v1521
      %v1550 = vadd.f32 %v1520, %v1522
      %v1551 = vadd.f32 %v1549, 6.5025
      %v1552 = vadd.f32 %v1550, 6.5025
      %v1553 = vrcp.pop %v1551
      %v1554 = vmul.f32 %v1547, %v1553
      %v1555 = vrcp.pop %v1552
      %v1556 = vmul.f32 %v1548, %v1555
      %v1557 = vmul.f32 %v1543, %v1554
      %v1558 = vmul.f32 %v1544, %v1556
      %v1559 = vsel %vm1021, %v1557, 0.0
      %v1560 = vsel %vm1021, %v1558, 0.0
      %v1561 = vadd.f32 %v1559, %v1560
      %1562 = vadd.xlane.f32.xlu0 %v1561
      %v1563 = vpop.xlane.xlu0 %1562
      %v1564 = vrot.slane %v1563, 4
      %v1565 = vadd.f32 %v1563, %v1564
      %v1566 = vrot.slane %v1565, 2
      %v1567 = vadd.f32 %v1565, %v1566
      %v1568 = vrot.slane %v1567, 1
      %v1569 = vadd.f32 %v1567, %v1568
      %s1570 = vtos %v1569
      %v1571 = vsel %vm1021, %v1543, 0.0
      %v1572 = vsel %vm1021, %v1544, 0.0
      %v1573 = vadd.f32 %v1571, %v1572
      %1574 = vadd.xlane.f32.xlu0 %v1573
      %v1575 = vpop.xlane.xlu0 %1574
      %v1576 = vrot.slane %v1575, 4
      %v1577 = vadd.f32 %v1575, %v1576
      %v1578 = vrot.slane %v1577, 2
      %v1579 = vadd.f32 %v1577, %v1578
      %v1580 = vrot.slane %v1579, 1
      %v1581 = vadd.f32 %v1579, %v1580
      %s1582 = vtos %v1581
      %v1583 = vld [vmem:[%s10] sm:$0xff]
      %v1584 = vld [vmem:[%s10 + $0x8] sm:$0xff]
      %v1585 = vld [vmem:[%s11] sm:$0xff]
      %v1586 = vld [vmem:[%s11 + $0x8] sm:$0xff]
      %v1587 = vld [vmem:[%s11 + $0x10] sm:$0xff]
      %v1588 = vld [vmem:[%s11 + $0x18] sm:$0xff]
      %v1589 = vld [vmem:[%s11 + $0x20] sm:$0xff]
      %v1590 = vld [vmem:[%s11 + $0x28] sm:$0xff]
      %v1591 = vld [vmem:[%s11 + $0x30] sm:$0xff]
      %v1592 = vld [vmem:[%s11 + $0x38] sm:$0xff]
      %v1594 = vsel %vm671, %v1583, 0
      %v1597 = vsel %vm671, %v1584, 0
      %1599 = vmatprep.subr.mxu0 0.0
      %1600 = vmatpush1.msra.mxu0 %v1186
      %1601 = vmatprep.subr.mxu0 0.0
      %1602 = vmatpush1.msra.mxu0 %v1191
      %1603 = vmatprep.subr.mxu0 0.0
      %1604 = vmatpush1.msra.mxu0 %v1196
      %1605 = vmatprep.subr.mxu0 0.0
      %1606 = vmatpush1.msra.mxu0 %v1201
      %1607 = vmatprep.subr.mxu0 0.0
      %1608 = vmatpush1.msra.mxu0 0.0
      %1609 = vmatprep.subr.mxu0 0.0
      %1610 = vmatpush1.msra.mxu0 0.0
      %1611 = vmatprep.subr.mxu0 0.0
      %1612 = vmatpush1.msra.mxu0 0.0
      %1613 = vmatprep.subr.mxu0 0.0
      %1614 = vmatpush1.msra.mxu0 0.0
      %1615 = vmatprep.subr.mxu0 0.0
      %1616 = vmatpush1.msra.mxu0 0.0
      %1617 = vmatprep.subr.mxu0 0.0
      %1618 = vmatpush1.msra.mxu0 0.0
      %1619 = vmatprep.subr.mxu0 0.0
      %1620 = vmatpush1.msra.mxu0 0.0
      %1621 = vmatprep.subr.mxu0 0.0
      %1622 = vmatpush1.msra.mxu0 0.0
      %1623 = vmatprep.subr.mxu0 0.0
      %1624 = vmatpush1.msra.mxu0 0.0
      %1625 = vmatprep.subr.mxu0 0.0
      %1626 = vmatpush1.msra.mxu0 0.0
      %1627 = vmatprep.subr.mxu0 0.0
      %1628 = vmatpush1.msra.mxu0 0.0
      %1629 = vmatprep.subr.mxu0 0.0
      %1630 = vmatpush1.msra.mxu0 0.0
      %1631 = vmatprep.subr.mxu0 0.0
      %1632 = vmatpush1.msra.mxu0 0.0
      %1633 = vmatprep.subr.mxu0 0.0
      %1634 = vmatpush1.msra.mxu0 0.0
      %1635 = vmatprep.subr.mxu0 0.0
      %1636 = vmatpush1.msra.mxu0 0.0
      %1637 = vmatprep.subr.mxu0 0.0
      %1638 = vmatpush1.msra.mxu0 0.0
      %1639 = vmatprep.subr.mxu0 0.0
      %1640 = vmatpush1.msra.mxu0 0.0
      %1641 = vmatprep.subr.mxu0 0.0
      %1642 = vmatpush1.msra.mxu0 0.0
      %1643 = vmatprep.subr.mxu0 0.0
      %1644 = vmatpush1.msra.mxu0 0.0
      %1645 = vmatprep.subr.mxu0 0.0
      %1646 = vmatpush1.msra.mxu0 0.0
      %1647 = vmatprep.subr.mxu0 0.0
      %1648 = vmatpush1.msra.mxu0 0.0
      %1649 = vmatprep.subr.mxu0 0.0
      %1650 = vmatpush1.msra.mxu0 0.0
      %1651 = vmatprep.subr.mxu0 0.0
      %1652 = vmatpush1.msra.mxu0 0.0
      %1653 = vmatprep.subr.mxu0 0.0
      %1654 = vmatpush1.msra.mxu0 0.0
      %1655 = vmatprep.subr.mxu0 0.0
      %1656 = vmatpush1.msra.mxu0 0.0
      %1657 = vmatprep.subr.mxu0 0.0
      %1658 = vmatpush1.msra.mxu0 0.0
      %1659 = vmatprep.subr.mxu0 0.0
      %1660 = vmatpush1.msra.mxu0 0.0
      %1661 = vmatprep.subr.mxu0 0.0
      %1662 = vmatpush1.msra.mxu0 0.0
      %1663 = vmatprep.mubr.f32.mxu0 0.0
      %1664 = vmatmul.mubr.f32.gmra.mrb[0].mxu0 %v1594
      %v1665 = vpop.f32.mrb[0].mxu0
      %v1666 = vadd.f32 0.0, %v1665
      %v1667 = vpop.f32.mrb[0].mxu0
      %1668 = vmatprep.mubr.f32.mxu0 0.0
      %1669 = vmatmul.mubr.f32.gmra.mrb[0].mxu0 %v1597
      %v1670 = vpop.f32.mrb[0].mxu0
      %v1671 = vadd.f32 0.0, %v1670
      %v1672 = vpop.f32.mrb[0].mxu0
      %1673 = vdwg.mxu0
      %v1675 = vsel %vm1021, %v1666, 0
      %v1678 = vsel %vm1021, %v1671, 0
      %1680 = vmatprep.subr.mxu0 0.0
      %1681 = vmatpush1.msra.mxu0 %v1585
      %1682 = vmatprep.subr.mxu0 0.0
      %1683 = vmatpush1.msra.mxu0 %v1586
      %1684 = vmatprep.subr.mxu0 0.0
      %1685 = vmatpush1.msra.mxu0 %v1587
      %1686 = vmatprep.subr.mxu0 0.0
      %1687 = vmatpush1.msra.mxu0 %v1588
      %1688 = vmatprep.subr.mxu0 0.0
      %1689 = vmatpush1.msra.mxu0 %v1589
      %1690 = vmatprep.subr.mxu0 0.0
      %1691 = vmatpush1.msra.mxu0 %v1590
      %1692 = vmatprep.subr.mxu0 0.0
      %1693 = vmatpush1.msra.mxu0 %v1591
      %1694 = vmatprep.subr.mxu0 0.0
      %1695 = vmatpush1.msra.mxu0 %v1592
      %1696 = vmatprep.subr.mxu0 0.0
      %1697 = vmatpush1.msra.mxu0 0.0
      %1698 = vmatprep.subr.mxu0 0.0
      %1699 = vmatpush1.msra.mxu0 0.0
      %1700 = vmatprep.subr.mxu0 0.0
      %1701 = vmatpush1.msra.mxu0 0.0
      %1702 = vmatprep.subr.mxu0 0.0
      %1703 = vmatpush1.msra.mxu0 0.0
      %1704 = vmatprep.subr.mxu0 0.0
      %1705 = vmatpush1.msra.mxu0 0.0
      %1706 = vmatprep.subr.mxu0 0.0
      %1707 = vmatpush1.msra.mxu0 0.0
      %1708 = vmatprep.subr.mxu0 0.0
      %1709 = vmatpush1.msra.mxu0 0.0
      %1710 = vmatprep.subr.mxu0 0.0
      %1711 = vmatpush1.msra.mxu0 0.0
      %1712 = vmatprep.subr.mxu0 0.0
      %1713 = vmatpush1.msra.mxu0 0.0
      %1714 = vmatprep.subr.mxu0 0.0
      %1715 = vmatpush1.msra.mxu0 0.0
      %1716 = vmatprep.subr.mxu0 0.0
      %1717 = vmatpush1.msra.mxu0 0.0
      %1718 = vmatprep.subr.mxu0 0.0
      %1719 = vmatpush1.msra.mxu0 0.0
      %1720 = vmatprep.subr.mxu0 0.0
      %1721 = vmatpush1.msra.mxu0 0.0
      %1722 = vmatprep.subr.mxu0 0.0
      %1723 = vmatpush1.msra.mxu0 0.0
      %1724 = vmatprep.subr.mxu0 0.0
      %1725 = vmatpush1.msra.mxu0 0.0
      %1726 = vmatprep.subr.mxu0 0.0
      %1727 = vmatpush1.msra.mxu0 0.0
      %1728 = vmatprep.subr.mxu0 0.0
      %1729 = vmatpush1.msra.mxu0 0.0
      %1730 = vmatprep.subr.mxu0 0.0
      %1731 = vmatpush1.msra.mxu0 0.0
      %1732 = vmatprep.subr.mxu0 0.0
      %1733 = vmatpush1.msra.mxu0 0.0
      %1734 = vmatprep.subr.mxu0 0.0
      %1735 = vmatpush1.msra.mxu0 0.0
      %1736 = vmatprep.subr.mxu0 0.0
      %1737 = vmatpush1.msra.mxu0 0.0
      %1738 = vmatprep.subr.mxu0 0.0
      %1739 = vmatpush1.msra.mxu0 0.0
      %1740 = vmatprep.subr.mxu0 0.0
      %1741 = vmatpush1.msra.mxu0 0.0
      %1742 = vmatprep.subr.mxu0 0.0
      %1743 = vmatpush1.msra.mxu0 0.0
      %1744 = vmatprep.mubr.f32.mxu0 0.0
      %1745 = vmatmul.mubr.f32.gmra.mrb[0].mxu0 %v1675
      %v1746 = vpop.f32.mrb[0].mxu0
      %v1747 = vadd.f32 0.0, %v1746
      %v1748 = vpop.f32.mrb[0].mxu0
      %1749 = vmatprep.mubr.f32.mxu0 0.0
      %1750 = vmatmul.mubr.f32.gmra.mrb[0].mxu0 %v1678
      %v1751 = vpop.f32.mrb[0].mxu0
      %v1752 = vadd.f32 0.0, %v1751
      %v1753 = vpop.f32.mrb[0].mxu0
      %1754 = vdwg.mxu0
      %v1755 = vld [vmem:[%s6] sm:$0xff]
      %v1756 = vld [vmem:[%s6 + $0x8] sm:$0xff]
      %v1757 = vld [vmem:[%s6 + $0x10] sm:$0xff]
      %v1758 = vld [vmem:[%s6 + $0x18] sm:$0xff]
      %v1759 = vld [vmem:[%s6 + $0x20] sm:$0xff]
      %v1760 = vld [vmem:[%s7] sm:$0xff]
      %v1761 = vld [vmem:[%s7 + $0x8] sm:$0xff]
      %v1762 = vld [vmem:[%s7 + $0x10] sm:$0xff]
      %v1763 = vld [vmem:[%s7 + $0x18] sm:$0xff]
      %v1764 = vmul.f32 %v1747, %v1747
      %v1765 = vmul.f32 %v1752, %v1752
      %v1766 = vmul.f32 %v1747, %v1752
      %v1768 = vsel %vm671, %v1747, 0
      %v1771 = vsel %vm671, %v1752, 0
      %v1774 = vsel %vm671, %v1764, 0
      %v1777 = vsel %vm671, %v1765, 0
      %v1780 = vsel %vm671, %v1766, 0
      %1782 = vmatprep.subr.mxu0 0.0
      %1783 = vmatpush1.msra.mxu0 %v1760
      %1784 = vmatprep.subr.mxu0 0.0
      %1785 = vmatpush1.msra.mxu0 %v1761
      %1786 = vmatprep.subr.mxu0 0.0
      %1787 = vmatpush1.msra.mxu0 %v1762
      %1788 = vmatprep.subr.mxu0 0.0
      %1789 = vmatpush1.msra.mxu0 %v1763
      %1790 = vmatprep.subr.mxu0 0.0
      %1791 = vmatpush1.msra.mxu0 0.0
      %1792 = vmatprep.subr.mxu0 0.0
      %1793 = vmatpush1.msra.mxu0 0.0
      %1794 = vmatprep.subr.mxu0 0.0
      %1795 = vmatpush1.msra.mxu0 0.0
      %1796 = vmatprep.subr.mxu0 0.0
      %1797 = vmatpush1.msra.mxu0 0.0
      %1798 = vmatprep.subr.mxu0 0.0
      %1799 = vmatpush1.msra.mxu0 0.0
      %1800 = vmatprep.subr.mxu0 0.0
      %1801 = vmatpush1.msra.mxu0 0.0
      %1802 = vmatprep.subr.mxu0 0.0
      %1803 = vmatpush1.msra.mxu0 0.0
      %1804 = vmatprep.subr.mxu0 0.0
      %1805 = vmatpush1.msra.mxu0 0.0
      %1806 = vmatprep.subr.mxu0 0.0
      %1807 = vmatpush1.msra.mxu0 0.0
      %1808 = vmatprep.subr.mxu0 0.0
      %1809 = vmatpush1.msra.mxu0 0.0
      %1810 = vmatprep.subr.mxu0 0.0
      %1811 = vmatpush1.msra.mxu0 0.0
      %1812 = vmatprep.subr.mxu0 0.0
      %1813 = vmatpush1.msra.mxu0 0.0
      %1814 = vmatprep.subr.mxu0 0.0
      %1815 = vmatpush1.msra.mxu0 0.0
      %1816 = vmatprep.subr.mxu0 0.0
      %1817 = vmatpush1.msra.mxu0 0.0
      %1818 = vmatprep.subr.mxu0 0.0
      %1819 = vmatpush1.msra.mxu0 0.0
      %1820 = vmatprep.subr.mxu0 0.0
      %1821 = vmatpush1.msra.mxu0 0.0
      %1822 = vmatprep.subr.mxu0 0.0
      %1823 = vmatpush1.msra.mxu0 0.0
      %1824 = vmatprep.subr.mxu0 0.0
      %1825 = vmatpush1.msra.mxu0 0.0
      %1826 = vmatprep.subr.mxu0 0.0
      %1827 = vmatpush1.msra.mxu0 0.0
      %1828 = vmatprep.subr.mxu0 0.0
      %1829 = vmatpush1.msra.mxu0 0.0
      %1830 = vmatprep.subr.mxu0 0.0
      %1831 = vmatpush1.msra.mxu0 0.0
      %1832 = vmatprep.subr.mxu0 0.0
      %1833 = vmatpush1.msra.mxu0 0.0
      %1834 = vmatprep.subr.mxu0 0.0
      %1835 = vmatpush1.msra.mxu0 0.0
      %1836 = vmatprep.subr.mxu0 0.0
      %1837 = vmatpush1.msra.mxu0 0.0
      %1838 = vmatprep.subr.mxu0 0.0
      %1839 = vmatpush1.msra.mxu0 0.0
      %1840 = vmatprep.subr.mxu0 0.0
      %1841 = vmatpush1.msra.mxu0 0.0
      %1842 = vmatprep.subr.mxu0 0.0
      %1843 = vmatpush1.msra.mxu0 0.0
      %1844 = vmatprep.subr.mxu0 0.0
      %1845 = vmatpush1.msra.mxu0 0.0
      %1846 = vmatprep.mubr.f32.mxu0 0.0
      %1847 = vmatmul.mubr.f32.gmra.mrb[0].mxu0 %v1768
      %v1848 = vpop.f32.mrb[0].mxu0
      %v1849 = vadd.f32 0.0, %v1848
      %v1850 = vpop.f32.mrb[0].mxu0
      %1851 = vmatprep.mubr.f32.mxu0 0.0
      %1852 = vmatmul.mubr.f32.gmra.mrb[0].mxu0 %v1771
      %v1853 = vpop.f32.mrb[0].mxu0
      %v1854 = vadd.f32 0.0, %v1853
      %v1855 = vpop.f32.mrb[0].mxu0
      %1856 = vmatprep.mubr.f32.mxu0 0.0
      %1857 = vmatmul.mubr.f32.gmra.mrb[0].mxu0 %v1774
      %v1858 = vpop.f32.mrb[0].mxu0
      %v1859 = vadd.f32 0.0, %v1858
      %v1860 = vpop.f32.mrb[0].mxu0
      %1861 = vmatprep.mubr.f32.mxu0 0.0
      %1862 = vmatmul.mubr.f32.gmra.mrb[0].mxu0 %v1777
      %v1863 = vpop.f32.mrb[0].mxu0
      %v1864 = vadd.f32 0.0, %v1863
      %v1865 = vpop.f32.mrb[0].mxu0
      %1866 = vmatprep.mubr.f32.mxu0 0.0
      %1867 = vmatmul.mubr.f32.gmra.mrb[0].mxu0 %v1780
      %v1868 = vpop.f32.mrb[0].mxu0
      %v1869 = vadd.f32 0.0, %v1868
      %v1870 = vpop.f32.mrb[0].mxu0
      %1871 = vdwg.mxu0
      %vm1872 = vcmask 326656
      %v1874 = vsel %vm1872, %v1755, 0
      %v1877 = vsel %vm1872, %v1756, 0
      %v1880 = vsel %vm1872, %v1757, 0
      %v1883 = vsel %vm1872, %v1758, 0
      %v1886 = vsel %vm1872, %v1759, 0
      %1888 = vmatprep.subr.mxu0 0.0
      %1889 = vmatpush1.msra.mxu0 %v1849
      %1890 = vmatprep.subr.mxu0 0.0
      %1891 = vmatpush1.msra.mxu0 %v1854
      %1892 = vmatprep.subr.mxu0 0.0
      %1893 = vmatpush1.msra.mxu0 %v1859
      %1894 = vmatprep.subr.mxu0 0.0
      %1895 = vmatpush1.msra.mxu0 %v1864
      %1896 = vmatprep.subr.mxu0 0.0
      %1897 = vmatpush1.msra.mxu0 %v1869
      %1898 = vmatprep.subr.mxu0 0.0
      %1899 = vmatpush1.msra.mxu0 0.0
      %1900 = vmatprep.subr.mxu0 0.0
      %1901 = vmatpush1.msra.mxu0 0.0
      %1902 = vmatprep.subr.mxu0 0.0
      %1903 = vmatpush1.msra.mxu0 0.0
      %1904 = vmatprep.subr.mxu0 0.0
      %1905 = vmatpush1.msra.mxu0 0.0
      %1906 = vmatprep.subr.mxu0 0.0
      %1907 = vmatpush1.msra.mxu0 0.0
      %1908 = vmatprep.subr.mxu0 0.0
      %1909 = vmatpush1.msra.mxu0 0.0
      %1910 = vmatprep.subr.mxu0 0.0
      %1911 = vmatpush1.msra.mxu0 0.0
      %1912 = vmatprep.subr.mxu0 0.0
      %1913 = vmatpush1.msra.mxu0 0.0
      %1914 = vmatprep.subr.mxu0 0.0
      %1915 = vmatpush1.msra.mxu0 0.0
      %1916 = vmatprep.subr.mxu0 0.0
      %1917 = vmatpush1.msra.mxu0 0.0
      %1918 = vmatprep.subr.mxu0 0.0
      %1919 = vmatpush1.msra.mxu0 0.0
      %1920 = vmatprep.subr.mxu0 0.0
      %1921 = vmatpush1.msra.mxu0 0.0
      %1922 = vmatprep.subr.mxu0 0.0
      %1923 = vmatpush1.msra.mxu0 0.0
      %1924 = vmatprep.subr.mxu0 0.0
      %1925 = vmatpush1.msra.mxu0 0.0
      %1926 = vmatprep.subr.mxu0 0.0
      %1927 = vmatpush1.msra.mxu0 0.0
      %1928 = vmatprep.subr.mxu0 0.0
      %1929 = vmatpush1.msra.mxu0 0.0
      %1930 = vmatprep.subr.mxu0 0.0
      %1931 = vmatpush1.msra.mxu0 0.0
      %1932 = vmatprep.subr.mxu0 0.0
      %1933 = vmatpush1.msra.mxu0 0.0
      %1934 = vmatprep.subr.mxu0 0.0
      %1935 = vmatpush1.msra.mxu0 0.0
      %1936 = vmatprep.subr.mxu0 0.0
      %1937 = vmatpush1.msra.mxu0 0.0
      %1938 = vmatprep.subr.mxu0 0.0
      %1939 = vmatpush1.msra.mxu0 0.0
      %1940 = vmatprep.subr.mxu0 0.0
      %1941 = vmatpush1.msra.mxu0 0.0
      %1942 = vmatprep.subr.mxu0 0.0
      %1943 = vmatpush1.msra.mxu0 0.0
      %1944 = vmatprep.subr.mxu0 0.0
      %1945 = vmatpush1.msra.mxu0 0.0
      %1946 = vmatprep.subr.mxu0 0.0
      %1947 = vmatpush1.msra.mxu0 0.0
      %1948 = vmatprep.subr.mxu0 0.0
      %1949 = vmatpush1.msra.mxu0 0.0
      %1950 = vmatprep.subr.mxu0 0.0
      %1951 = vmatpush1.msra.mxu0 0.0
      %1952 = vmatprep.mubr.f32.mxu0 0.0
      %1953 = vmatmul.mubr.f32.gmra.mrb[0].mxu0 %v1874
      %v1954 = vpop.f32.mrb[0].mxu0
      %v1955 = vadd.f32 0.0, %v1954
      %v1956 = vpop.f32.mrb[0].mxu0
      %1957 = vmatprep.mubr.f32.mxu0 0.0
      %1958 = vmatmul.mubr.f32.gmra.mrb[0].mxu0 %v1877
      %v1959 = vpop.f32.mrb[0].mxu0
      %v1960 = vadd.f32 0.0, %v1959
      %v1961 = vpop.f32.mrb[0].mxu0
      %1962 = vmatprep.mubr.f32.mxu0 0.0
      %1963 = vmatmul.mubr.f32.gmra.mrb[0].mxu0 %v1880
      %v1964 = vpop.f32.mrb[0].mxu0
      %v1965 = vadd.f32 0.0, %v1964
      %v1966 = vpop.f32.mrb[0].mxu0
      %1967 = vmatprep.mubr.f32.mxu0 0.0
      %1968 = vmatmul.mubr.f32.gmra.mrb[0].mxu0 %v1883
      %v1969 = vpop.f32.mrb[0].mxu0
      %v1970 = vadd.f32 0.0, %v1969
      %v1971 = vpop.f32.mrb[0].mxu0
      %1972 = vmatprep.mubr.f32.mxu0 0.0
      %1973 = vmatmul.mubr.f32.gmra.mrb[0].mxu0 %v1886
      %v1974 = vpop.f32.mrb[0].mxu0
      %v1975 = vadd.f32 0.0, %v1974
      %v1976 = vpop.f32.mrb[0].mxu0
      %1977 = vdwg.mxu0
      %v1978 = vmul.f32 %v1955, %v1955
      %v1979 = vmul.f32 %v1960, %v1960
      %v1980 = vmul.f32 %v1955, %v1960
      %v1981 = vsub.f32 %v1965, %v1978
      %v1982 = vsub.f32 %v1970, %v1979
      %v1983 = vsub.f32 %v1975, %v1980
      %v1984 = vmul.f32 %v1983, 2.0
      %v1985 = vadd.f32 %v1984, 58.5225
      %v1986 = vadd.f32 %v1981, %v1982
      %v1987 = vadd.f32 %v1986, 58.5225
      %v1988 = vrcp.pop %v1987
      %v1989 = vmul.f32 1.0, %v1988
      %v1990 = vmul.f32 %v1985, %v1989
      %v1991 = vmul.f32 %v1980, 2.0
      %v1992 = vadd.f32 %v1991, 6.5025
      %v1993 = vadd.f32 %v1978, %v1979
      %v1994 = vadd.f32 %v1993, 6.5025
      %v1995 = vrcp.pop %v1994
      %v1996 = vmul.f32 %v1992, %v1995
      %v1997 = vmul.f32 %v1990, %v1996
      %v1998 = vsel %vm671, %v1997, 0.0
      %1999 = vadd.xlane.f32.xlu0 %v1998
      %v2000 = vpop.xlane.xlu0 %1999
      %v2001 = vrot.slane %v2000, 4
      %v2002 = vadd.f32 %v2000, %v2001
      %v2003 = vrot.slane %v2002, 2
      %v2004 = vadd.f32 %v2002, %v2003
      %v2005 = vrot.slane %v2004, 1
      %v2006 = vadd.f32 %v2004, %v2005
      %s2007 = vtos %v2006
      %v2008 = vsel %vm671, %v1990, 0.0
      %2009 = vadd.xlane.f32.xlu0 %v2008
      %v2010 = vpop.xlane.xlu0 %2009
      %v2011 = vrot.slane %v2010, 4
      %v2012 = vadd.f32 %v2010, %v2011
      %v2013 = vrot.slane %v2012, 2
      %v2014 = vadd.f32 %v2012, %v2013
      %v2015 = vrot.slane %v2014, 1
      %v2016 = vadd.f32 %v2014, %v2015
      %s2017 = vtos %v2016
      %v2018 = vlaneseq
      %v2019 = vand.u32 %v2018, 127
      %vm2020 = vcmp.eq.s32.totalorder %v2019, 0
      %v2021 = vstv %s988
      %v2022 = vsel %vm2020, %v2021, 0.0
      %vm2023 = vcmp.eq.s32.totalorder %v2019, 1
      %v2024 = vstv %s1000
      %v2025 = vsel %vm2023, %v2024, %v2022
      %vm2026 = vcmp.eq.s32.totalorder %v2019, 2
      %v2027 = vstv %s1570
      %v2028 = vsel %vm2026, %v2027, %v2025
      %vm2029 = vcmp.eq.s32.totalorder %v2019, 3
      %v2030 = vstv %s1582
      %v2031 = vsel %vm2029, %v2030, %v2028
      %vm2032 = vcmp.eq.s32.totalorder %v2019, 4
      %v2033 = vstv %s2007
      %v2034 = vsel %vm2032, %v2033, %v2031
      %vm2035 = vcmp.eq.s32.totalorder %v2019, 5
      %v2036 = vstv %s2017
      %v2037 = vsel %vm2035, %v2036, %v2034
      %vm2038 = vcmask 40960
      %2039 = vst.msk [vmem:[%s429] sm:$0x1] %vm2038, %v2037
      %p2040 = scmp.lt.s32.totalorder %s23, 1
      %s2041 = scalar_select %p2040, %s23, 1
      %s2042 = scalar_lea.vmem %s12, %s2041
      // Predicated region
      $region69: #{ms_ssim_forward.1} parent=67 // pred_check
        %p2043 = pneg %p303
      $region70: #{ms_ssim_forward.1} parent=67 // pred_check_branch
        %2045 = sbr.rel (%p2043) target = $region72
      $region71: #{ms_ssim_forward.1} parent=67 // pred_region
        _
      $region72: #{ms_ssim_forward.1} parent=67 // pred_fallthru
        _
    $region68: #{ms_ssim_forward.1} parent=5 // pred_fallthru
      _
    %p2046 = scmp.le.s32.totalorder 2, %s18
    // Predicated region
    $region73: #{ms_ssim_forward.1} parent=5 // pred_check
      %p2047 = pneg %p2046
    $region74: #{ms_ssim_forward.1} parent=5 // pred_check_branch
      %2049 = sbr.rel (%p2047) target = $region76
    $region75: #{ms_ssim_forward.1} parent=5 // pred_region
      %s2050 = ssub.s32 %s18, 2
      // Predicated region
      $region77: #{ms_ssim_forward.1} parent=75 // pred_check
        %p2051 = pneg %p309
      $region78: #{ms_ssim_forward.1} parent=75 // pred_check_branch
        %2053 = sbr.rel (%p2051) target = $region80
      $region79: #{ms_ssim_forward.1} parent=75 // pred_region
        %p2054 = scmp.lt.s32.totalorder %s24, 1
        %s2055 = scalar_select %p2054, %s24, 1
        %s2056 = scalar_lea.vmem %s12, %s2055
      $region80: #{ms_ssim_forward.1} parent=75 // pred_fallthru
        _
    $region76: #{ms_ssim_forward.1} parent=5 // pred_fallthru
      _
  $region6: #{ms_ssim_forward.1} parent=0 // loop_footer
    %s22 = sadd.s32 1, %s18
  $region7: #{ms_ssim_forward.1} parent=0 // loop_footer_branch
    %17 = sbr.rel target = $region3
  $region8: #{ms_ssim_forward.1} parent=0 // loop_exit
    _

</llo_original>
